<compile_context>
chip_gen: v7x
topology: tpu7x:2x2x1
jax: 0.10.0
libtpu: 0.0.40
codegen_flags: <defaults>
</compile_context>

<pallas_src>
import functools

import jax
import jax.numpy as jnp
from jax.experimental import pallas as pl
from jax.experimental.pallas import tpu as pltpu


def _round_up(x, m):
    return ((x + m - 1) // m) * m


def _cdiv(a, b):
    return -(-a // b)


def _vmem_capacity_bytes():
    try:
        return int(pltpu.get_tpu_info().vmem_capacity_bytes)
    except Exception:
        return 64 * 1024 * 1024          # v7x floor; conservative everywhere


def _tile_vmem_bytes(NB, TH, Wp, Cin_p, Cout_p, halo, K, x_item, pw_item):
    """VMEM footprint of one grid step (pipelined blocks + live in-kernel set)."""
    R = (TH + halo) * Wp                 # flattened rows per image slab
    M = TH * Wp                          # flattened output rows per image slab
    in_block = NB * R * Cin_p * x_item
    out_block = NB * M * Cout_p * x_item
    # weights: taps (input dtype) + pointwise (mxu dtype) + bias (f32).
    w_bytes = (K * K * Cin_p) * x_item + Cin_p * Cout_p * pw_item + Cout_p * 4
    # BlockSpec pipelining double-buffers every block (weights included; we do not
    # rely on single-buffering constant-index blocks for compile safety).
    blocks = 2 * (in_block + out_block + w_bytes)
    # live compute set: slab copy + (K-1) rolled slabs (input dtype), f32 acc,
    # one f32 per-tap cast temp, the MXU-dtype matmul operand, and the f32 result.
    live = (K * NB * R * Cin_p) * x_item \
        + NB * M * Cin_p * 4 * 2 \
        + NB * M * Cin_p * pw_item \
        + NB * M * Cout_p * 4
    return blocks + live


def _pick_tiling(N, H, Wp, Cin_p, Cout_p, halo, K, x_item, pw_item):
    """Choose (TH, n_th, NB): H-tile rows, tiles per image, images per block."""
    budget = int(_vmem_capacity_bytes() * 0.45)

    def fits(th, nb):
        return _tile_vmem_bytes(nb, th, Wp, Cin_p, Cout_p, halo, K,
                                x_item, pw_item) <= budget

    # H-tile candidates: multiples of 8 capped at H.  H gets padded to n_th*TH
    # host-side, so TH need not divide H.
    cands = sorted({min(8 * k, H) for k in range(1, _cdiv(H, 8) + 1)})

    fit = [t for t in cands if fits(t, 1)]
    TH = fit[-1] if fit else cands[0]    # nothing fits -> smallest tile (may spill)

    # Shrink TH until the grid has enough steps to feed both v7x TensorCores and
    # overlap DMA with compute (~4 steps when the image allows it).
    pref_steps = 4
    for t in sorted((c for c in cands if c <= TH), reverse=True):
        TH = t
        if N * _cdiv(H, t) >= pref_steps:
            break

    n_th = _cdiv(H, TH)
    total = N * n_th

    # Batch-fold small tiles so the MXU M dimension is >= ~256, while keeping at
    # least 2 grid steps (when available) and staying inside the VMEM budget.
    NB = 1
    M_per = TH * Wp
    if M_per < 256:
        want = _cdiv(256, M_per)
        for nb in range(2, total + 1):
            if nb > want:
                break
            if total % nb:
                continue
            if total >= 2 and total // nb < 2:
                continue
            if fits(TH, nb):
                NB = nb
    return TH, n_th, NB


def _sepconv_kernel(x_ref, dw_ref, pw_ref, bias_ref, out_ref, *, K, d):
    # x_ref:    (NB, TH+halo, Wp, Cin_p)   pre-gathered overlapping input slabs
    # dw_ref:   (K*K, Cin_p)               depthwise taps (BN scale folded in)
    # pw_ref:   (Cin_p, Cout_p)            pointwise weights (bf16 MXU feed)
    # bias_ref: (1, Cout_p)                folded BN shift after pointwise (f32)
    # out_ref:  (NB, TH, Wp, Cout_p)
    NB, THh, Wp, Cin = x_ref.shape
    TH = out_ref.shape[1]
    Cout = out_ref.shape[3]
    R = THh * Wp                         # flattened rows per image slab
    M = TH * Wp                          # flattened output rows per image slab
    f32 = jnp.float32

    dw = dw_ref[...].astype(f32)         # single hoisted cast of the tap table

    # Flattened slab in the input dtype.  Wp % 8 == 0 -> these reshapes are
    # layout no-ops.
    x2 = x_ref[...].reshape(NB * R, Cin)

    # Only K-1 column rolls (XLU); each is reused across all K row offsets.
    # Wrapped rows/columns land only in output columns >= W, which the XLA
    # epilogue discards.
    rolled = [x2.reshape(NB, R, Cin)]
    for kx in range(1, K):
        s = kx * d
        r = pltpu.roll(x2, shift=(NB * R - s) % (NB * R), axis=0)
        rolled.append(r.reshape(NB, R, Cin))

    # Depthwise accumulation in f32.  Row offsets ky*d*Wp are multiples of 8
    # sublanes -> aligned slices, no extra XLU work.
    acc = rolled[0][:, :M, :].astype(f32) * dw[0, :]
    for t in range(1, K * K):
        ky, kx = divmod(t, K)
        off = ky * d * Wp
        src = rolled[kx][:, off:off + M, :]
        acc = acc + src.astype(f32) * dw[t, :]

    # Pointwise 1x1 conv on the MXU over the full slab (no sublane compaction),
    # fed in the pointwise-weight dtype, f32 accumulate.
    y = jnp.dot(acc.reshape(NB * M, Cin).astype(pw_ref.dtype), pw_ref[...],
                preferred_element_type=f32)              # (NB*M, Cout_p)
    y = y + bias_ref[...]
    out_ref[...] = y.reshape(NB, TH, Wp, Cout).astype(out_ref.dtype)


def separable_conv2d(x_nchw, dw_weight, pw_weight, bn_gamma, bn_beta,
                     bn_mean, bn_var, *, kernel_size=3, stride=1, dilation=1,
                     eps=1e-5, mxu_bf16=True):
    """Forward pass of SeparableConv2d (NCHW in / NCHW out)."""
    if stride != 1:
        # TODO(synk): stride > 1 is not implemented.
        raise NotImplementedError("separable_conv2d currently supports stride=1 only")

    N, Cin, H, W = x_nchw.shape
    Cout = pw_weight.shape[0]
    K = kernel_size
    d = dilation
    dtype = x_nchw.dtype
    x_item = jnp.dtype(dtype).itemsize
    pw_dt = jnp.bfloat16 if mxu_bf16 else dtype
    pw_item = jnp.dtype(pw_dt).itemsize

    k_eff = K + (K - 1) * (d - 1)
    pad_total = k_eff - 1                       # == (K - 1) * d
    pad_beg = pad_total // 2
    halo = pad_total

    LANE = 128
    Cin_p = _round_up(Cin, LANE)
    Cout_p = _round_up(Cout, LANE)
    Wp = _round_up(W + pad_total, 8)            # padded input width (sublane aligned)

    # ---- chip-aware tiling ---------------------------------------------------
    TH, n_th, NB = _pick_tiling(N, H, Wp, Cin_p, Cout_p, halo, K, x_item, pw_item)
    Hp_out = n_th * TH
    n_steps = (N * n_th) // NB

    # ---- glue: layout, padding, BN folding, tile gather (plain XLA) ----------
    x = jnp.transpose(x_nchw, (0, 2, 3, 1))                          # NHWC
    x = jnp.pad(x, ((0, 0),
                    (pad_beg, Hp_out + halo - pad_beg - H),
                    (pad_beg, Wp - pad_beg - W),
                    (0, Cin_p - Cin)))                               # (N, Hp_out+halo, Wp, Cin_p)

    # Overlapping (TH + halo)-row tiles, pre-gathered host-side: single Blocked
    # input spec, no in-kernel concatenate (re-reads ~halo/TH of the input).
    tiles = [x[:, t * TH:t * TH + TH + halo] for t in range(n_th)]
    x_tiles = jnp.stack(tiles, axis=1).reshape(N * n_th, TH + halo, Wp, Cin_p)

    scale = bn_gamma / jnp.sqrt(bn_var + eps)                        # (Cin,)
    shift = bn_beta - bn_mean * scale                                # (Cin,)

    dw = jnp.transpose(dw_weight[:, 0, :, :], (1, 2, 0)).reshape(K * K, Cin)
    dw = (dw * scale[None, :]).astype(dtype)                         # BN scale folded into taps
    dw = jnp.pad(dw, ((0, 0), (0, Cin_p - Cin)))

    pw = jnp.transpose(pw_weight[:, :, 0, 0], (1, 0))                # (Cin, Cout), f32 math
    bias = (shift @ pw).astype(jnp.float32)                          # BN shift folded after pointwise
    bias = jnp.pad(bias, (0, Cout_p - Cout)).reshape(1, Cout_p)
    pw = jnp.pad(pw.astype(pw_dt), ((0, Cin_p - Cin), (0, Cout_p - Cout)))

    kernel = functools.partial(_sepconv_kernel, K=K, d=d)

    need = _tile_vmem_bytes(NB, TH, Wp, Cin_p, Cout_p, halo, K, x_item, pw_item)
    cap = _vmem_capacity_bytes()
    vmem_limit = int(min(cap * 0.9, max(need * 1.4, 32 * 1024 * 1024)))

    out_tiles = pl.pallas_call(
        kernel,
        out_shape=jax.ShapeDtypeStruct((N * n_th, TH, Wp, Cout_p), dtype),
        grid_spec=pltpu.PrefetchScalarGridSpec(
            num_scalar_prefetch=0,
            grid=(n_steps,),
            in_specs=[
                pl.BlockSpec((NB, TH + halo, Wp, Cin_p), lambda i: (i, 0, 0, 0)),
                pl.BlockSpec((K * K, Cin_p), lambda i: (0, 0)),
                pl.BlockSpec((Cin_p, Cout_p), lambda i: (0, 0)),
                pl.BlockSpec((1, Cout_p), lambda i: (0, 0)),
            ],
            out_specs=pl.BlockSpec((NB, TH, Wp, Cout_p), lambda i: (i, 0, 0, 0)),
        ),
        compiler_params=pltpu.CompilerParams(
            dimension_semantics=("parallel",),
            vmem_limit_bytes=vmem_limit),
    )(x_tiles, dw, pw, bias)

    # Epilogue: drop padded rows / garbage columns / padded channels, back to NCHW.
    out = out_tiles.reshape(N, Hp_out, Wp, Cout_p)[:, :H, :W, :Cout]
    return jnp.transpose(out, (0, 3, 1, 2))


def _reference(x_nchw, dw_weight, pw_weight, bn_gamma, bn_beta, bn_mean, bn_var,
               *, kernel_size=3, dilation=1, eps=1e-5):
    """Pure-JAX (lax.conv) reference for correctness checking."""
    Cin = x_nchw.shape[1]
    k_eff = kernel_size + (kernel_size - 1) * (dilation - 1)
    pad_total = k_eff - 1
    pad_beg = pad_total // 2
    pad_end = pad_total - pad_beg
    xp = jnp.pad(x_nchw, ((0, 0), (0, 0), (pad_beg, pad_end), (pad_beg, pad_end)))
    y = jax.lax.conv_general_dilated(
        xp, dw_weight, window_strides=(1, 1), padding="VALID",
        rhs_dilation=(dilation, dilation), feature_group_count=Cin,
        dimension_numbers=("NCHW", "OIHW", "NCHW"))
    scale = (bn_gamma / jnp.sqrt(bn_var + eps)).reshape(1, Cin, 1, 1)
    bias = (bn_beta - bn_mean * bn_gamma / jnp.sqrt(bn_var + eps)).reshape(1, Cin, 1, 1)
    y = y * scale + bias
    y = jax.lax.conv_general_dilated(
        y, pw_weight, window_strides=(1, 1), padding="VALID",
        dimension_numbers=("NCHW", "OIHW", "NCHW"))
    return y


if __name__ == "__main__":
    key = jax.random.PRNGKey(0)
    ks = jax.random.split(key, 14)

    # ---- Test 1: f32, 3x3, dilation 1 ---------------------------------------
    N, Cin, Cout, H, W, K = 2, 4, 8, 16, 16, 3
    x = jax.random.normal(ks[0], (N, Cin, H, W), jnp.float32)
    dw_w = jax.random.normal(ks[1], (Cin, 1, K, K), jnp.float32) * 0.1
    pw_w = jax.random.normal(ks[2], (Cout, Cin, 1, 1), jnp.float32) * 0.1
    g = jax.random.normal(ks[3], (Cin,), jnp.float32) * 0.1 + 1.0
    b = jax.random.normal(ks[4], (Cin,), jnp.float32) * 0.1
    m = jax.random.normal(ks[5], (Cin,), jnp.float32) * 0.1
    v = jnp.abs(jax.random.normal(ks[6], (Cin,), jnp.float32)) * 0.1 + 1.0

    ref = _reference(x, dw_w, pw_w, g, b, m, v, kernel_size=K, dilation=1)

    # exact path (f32 MXU feed) -> tight tolerance against the f32 reference
    out = separable_conv2d(x, dw_w, pw_w, g, b, m, v, kernel_size=K,
                           dilation=1, mxu_bf16=False)
    out = jax.block_until_ready(out)
    assert out.shape == (N, Cout, H, W), out.shape
    err = float(jnp.max(jnp.abs(out - ref)))
    assert jnp.allclose(out, ref, atol=1e-4, rtol=1e-4), err

    # default path (bf16 MXU feed, f32 accumulate) -> inference-grade tolerance
    out_bf = separable_conv2d(x, dw_w, pw_w, g, b, m, v, kernel_size=K, dilation=1)
    out_bf = jax.block_until_ready(out_bf)
    err_bf = float(jnp.max(jnp.abs(out_bf - ref)))
    assert jnp.allclose(out_bf, ref, atol=3e-2, rtol=3e-2), err_bf

    # ---- Test 2: bf16 activations, dilation 2, odd H/W (padding paths) ------
    N2, Cin2, Cout2, H2, W2 = 2, 6, 10, 11, 13
    x2f = jax.random.normal(ks[7], (N2, Cin2, H2, W2), jnp.float32)
    x2 = x2f.astype(jnp.bfloat16)
    dw2 = jax.random.normal(ks[8], (Cin2, 1, K, K), jnp.float32) * 0.1
    pw2 = jax.random.normal(ks[9], (Cout2, Cin2, 1, 1), jnp.float32) * 0.1
    g2 = jax.random.normal(ks[10], (Cin2,), jnp.float32) * 0.1 + 1.0
    b2 = jax.random.normal(ks[11], (Cin2,), jnp.float32) * 0.1
    m2 = jax.random.normal(ks[12], (Cin2,), jnp.float32) * 0.1
    v2 = jnp.abs(jax.random.normal(ks[13], (Cin2,), jnp.float32)) * 0.1 + 1.0

    ref2 = _reference(x2.astype(jnp.float32), dw2, pw2, g2, b2, m2, v2,
                      kernel_size=K, dilation=2)
    out2 = separable_conv2d(x2, dw2, pw2, g2, b2, m2, v2, kernel_size=K, dilation=2)
    out2 = jax.block_until_ready(out2).astype(jnp.float32)
    assert out2.shape == (N2, Cout2, H2, W2), out2.shape
    err2 = float(jnp.max(jnp.abs(out2 - ref2)))
    assert jnp.allclose(out2, ref2, atol=5e-2, rtol=5e-2), err2

    print("KERNEL_OK")
</pallas_src>

<mosaic_0001>
module attributes {stable_mosaic.version = 11 : i64} {
  func.func @_sepconv_kernel(%arg0: i32, %arg1: memref<2x10x24x128xf32, #tpu.memory_space<vmem>>, %arg2: memref<9x128xf32, #tpu.memory_space<vmem>>, %arg3: memref<128x128xf32, #tpu.memory_space<vmem>>, %arg4: memref<1x128xf32, #tpu.memory_space<vmem>>, %arg5: memref<2x8x24x128xf32, #tpu.memory_space<vmem>>) attributes {dimension_semantics = [#tpu.dimension_semantics<parallel>], iteration_bounds = array<i64: 2>, scalar_prefetch = 0 : i64, scratch_operands = 0 : i64, tpu.core_type = #tpu.core_type<tc>, window_params = [{transform_indices = @transform_0, window_bounds = array<i64: 2, 10, 24, 128>}, {pipeline_mode = #tpu.pipeline_mode<synchronous>, transform_indices = @transform_1, window_bounds = array<i64: 9, 128>}, {pipeline_mode = #tpu.pipeline_mode<synchronous>, transform_indices = @transform_2, window_bounds = array<i64: 128, 128>}, {pipeline_mode = #tpu.pipeline_mode<synchronous>, transform_indices = @transform_3, window_bounds = array<i64: 1, 128>}, {transform_indices = @transform_4, window_bounds = array<i64: 2, 8, 24, 128>}]} {
    %c0 = arith.constant 0 : index
    %c0_0 = arith.constant 0 : index
    %0 = vector.load %arg2[%c0, %c0_0] : memref<9x128xf32, #tpu.memory_space<vmem>>, vector<9x128xf32>
    %c0_1 = arith.constant 0 : index
    %c0_2 = arith.constant 0 : index
    %c0_3 = arith.constant 0 : index
    %c0_4 = arith.constant 0 : index
    %1 = vector.load %arg1[%c0_1, %c0_2, %c0_3, %c0_4] : memref<2x10x24x128xf32, #tpu.memory_space<vmem>>, vector<2x10x24x128xf32>
    %2 = vector.shape_cast %1 : vector<2x10x24x128xf32> to vector<480x128xf32>
    %3 = vector.shape_cast %2 : vector<480x128xf32> to vector<2x240x128xf32>
    %c479_i32 = arith.constant 479 : i32
    %4 = tpu.dynamic_rotate %2 by %c479_i32 dim 0 : vector<480x128xf32>, i32 -> vector<480x128xf32>
    %5 = vector.shape_cast %4 : vector<480x128xf32> to vector<2x240x128xf32>
    %c478_i32 = arith.constant 478 : i32
    %6 = tpu.dynamic_rotate %2 by %c478_i32 dim 0 : vector<480x128xf32>, i32 -> vector<480x128xf32>
    %7 = vector.shape_cast %6 : vector<480x128xf32> to vector<2x240x128xf32>
    %8 = vector.extract_strided_slice %3 {offsets = [0, 0, 0], sizes = [2, 192, 128], strides = [1, 1, 1]} : vector<2x240x128xf32> to vector<2x192x128xf32>
    %9 = vector.extract_strided_slice %0 {offsets = [0, 0], sizes = [1, 128], strides = [1, 1]} : vector<9x128xf32> to vector<1x128xf32>
    %10 = vector.shape_cast %9 : vector<1x128xf32> to vector<128xf32>
    %11 = vector.shape_cast %10 : vector<128xf32> to vector<1x1x128xf32>
    %12 = vector.broadcast %11 : vector<1x1x128xf32> to vector<2x192x128xf32>
    %13 = arith.mulf %8, %12 : vector<2x192x128xf32>
    %14 = vector.extract_strided_slice %5 {offsets = [0, 0, 0], sizes = [2, 192, 128], strides = [1, 1, 1]} : vector<2x240x128xf32> to vector<2x192x128xf32>
    %15 = vector.extract_strided_slice %0 {offsets = [1, 0], sizes = [1, 128], strides = [1, 1]} : vector<9x128xf32> to vector<1x128xf32>
    %16 = vector.shape_cast %15 : vector<1x128xf32> to vector<128xf32>
    %17 = vector.shape_cast %16 : vector<128xf32> to vector<1x1x128xf32>
    %18 = vector.broadcast %17 : vector<1x1x128xf32> to vector<2x192x128xf32>
    %19 = arith.mulf %14, %18 : vector<2x192x128xf32>
    %20 = arith.addf %13, %19 : vector<2x192x128xf32>
    %21 = vector.extract_strided_slice %7 {offsets = [0, 0, 0], sizes = [2, 192, 128], strides = [1, 1, 1]} : vector<2x240x128xf32> to vector<2x192x128xf32>
    %22 = vector.extract_strided_slice %0 {offsets = [2, 0], sizes = [1, 128], strides = [1, 1]} : vector<9x128xf32> to vector<1x128xf32>
    %23 = vector.shape_cast %22 : vector<1x128xf32> to vector<128xf32>
    %24 = vector.shape_cast %23 : vector<128xf32> to vector<1x1x128xf32>
    %25 = vector.broadcast %24 : vector<1x1x128xf32> to vector<2x192x128xf32>
    %26 = arith.mulf %21, %25 : vector<2x192x128xf32>
    %27 = arith.addf %20, %26 : vector<2x192x128xf32>
    %28 = vector.extract_strided_slice %3 {offsets = [0, 24, 0], sizes = [2, 192, 128], strides = [1, 1, 1]} : vector<2x240x128xf32> to vector<2x192x128xf32>
    %29 = vector.extract_strided_slice %0 {offsets = [3, 0], sizes = [1, 128], strides = [1, 1]} : vector<9x128xf32> to vector<1x128xf32>
    %30 = vector.shape_cast %29 : vector<1x128xf32> to vector<128xf32>
    %31 = vector.shape_cast %30 : vector<128xf32> to vector<1x1x128xf32>
    %32 = vector.broadcast %31 : vector<1x1x128xf32> to vector<2x192x128xf32>
    %33 = arith.mulf %28, %32 : vector<2x192x128xf32>
    %34 = arith.addf %27, %33 : vector<2x192x128xf32>
    %35 = vector.extract_strided_slice %5 {offsets = [0, 24, 0], sizes = [2, 192, 128], strides = [1, 1, 1]} : vector<2x240x128xf32> to vector<2x192x128xf32>
    %36 = vector.extract_strided_slice %0 {offsets = [4, 0], sizes = [1, 128], strides = [1, 1]} : vector<9x128xf32> to vector<1x128xf32>
    %37 = vector.shape_cast %36 : vector<1x128xf32> to vector<128xf32>
    %38 = vector.shape_cast %37 : vector<128xf32> to vector<1x1x128xf32>
    %39 = vector.broadcast %38 : vector<1x1x128xf32> to vector<2x192x128xf32>
    %40 = arith.mulf %35, %39 : vector<2x192x128xf32>
    %41 = arith.addf %34, %40 : vector<2x192x128xf32>
    %42 = vector.extract_strided_slice %7 {offsets = [0, 24, 0], sizes = [2, 192, 128], strides = [1, 1, 1]} : vector<2x240x128xf32> to vector<2x192x128xf32>
    %43 = vector.extract_strided_slice %0 {offsets = [5, 0], sizes = [1, 128], strides = [1, 1]} : vector<9x128xf32> to vector<1x128xf32>
    %44 = vector.shape_cast %43 : vector<1x128xf32> to vector<128xf32>
    %45 = vector.shape_cast %44 : vector<128xf32> to vector<1x1x128xf32>
    %46 = vector.broadcast %45 : vector<1x1x128xf32> to vector<2x192x128xf32>
    %47 = arith.mulf %42, %46 : vector<2x192x128xf32>
    %48 = arith.addf %41, %47 : vector<2x192x128xf32>
    %49 = vector.extract_strided_slice %3 {offsets = [0, 48, 0], sizes = [2, 192, 128], strides = [1, 1, 1]} : vector<2x240x128xf32> to vector<2x192x128xf32>
    %50 = vector.extract_strided_slice %0 {offsets = [6, 0], sizes = [1, 128], strides = [1, 1]} : vector<9x128xf32> to vector<1x128xf32>
    %51 = vector.shape_cast %50 : vector<1x128xf32> to vector<128xf32>
    %52 = vector.shape_cast %51 : vector<128xf32> to vector<1x1x128xf32>
    %53 = vector.broadcast %52 : vector<1x1x128xf32> to vector<2x192x128xf32>
    %54 = arith.mulf %49, %53 : vector<2x192x128xf32>
    %55 = arith.addf %48, %54 : vector<2x192x128xf32>
    %56 = vector.extract_strided_slice %5 {offsets = [0, 48, 0], sizes = [2, 192, 128], strides = [1, 1, 1]} : vector<2x240x128xf32> to vector<2x192x128xf32>
    %57 = vector.extract_strided_slice %0 {offsets = [7, 0], sizes = [1, 128], strides = [1, 1]} : vector<9x128xf32> to vector<1x128xf32>
    %58 = vector.shape_cast %57 : vector<1x128xf32> to vector<128xf32>
    %59 = vector.shape_cast %58 : vector<128xf32> to vector<1x1x128xf32>
    %60 = vector.broadcast %59 : vector<1x1x128xf32> to vector<2x192x128xf32>
    %61 = arith.mulf %56, %60 : vector<2x192x128xf32>
    %62 = arith.addf %55, %61 : vector<2x192x128xf32>
    %63 = vector.extract_strided_slice %7 {offsets = [0, 48, 0], sizes = [2, 192, 128], strides = [1, 1, 1]} : vector<2x240x128xf32> to vector<2x192x128xf32>
    %64 = vector.extract_strided_slice %0 {offsets = [8, 0], sizes = [1, 128], strides = [1, 1]} : vector<9x128xf32> to vector<1x128xf32>
    %65 = vector.shape_cast %64 : vector<1x128xf32> to vector<128xf32>
    %66 = vector.shape_cast %65 : vector<128xf32> to vector<1x1x128xf32>
    %67 = vector.broadcast %66 : vector<1x1x128xf32> to vector<2x192x128xf32>
    %68 = arith.mulf %63, %67 : vector<2x192x128xf32>
    %69 = arith.addf %62, %68 : vector<2x192x128xf32>
    %70 = vector.shape_cast %69 : vector<2x192x128xf32> to vector<384x128xf32>
    %c0_5 = arith.constant 0 : index
    %c0_6 = arith.constant 0 : index
    %71 = vector.load %arg3[%c0_5, %c0_6] : memref<128x128xf32, #tpu.memory_space<vmem>>, vector<128x128xf32>
    %cst = arith.constant dense<0.000000e+00> : vector<384x128xf32>
    %72 = tpu.matmul %70, %71, %cst {dimension_numbers = #tpu.dot_dimension_numbers<[1], [0], [0], [1], [0, 0, 1, 1], [], []>} : vector<384x128xf32>, vector<128x128xf32>, vector<384x128xf32> -> vector<384x128xf32>
    %c0_7 = arith.constant 0 : index
    %c0_8 = arith.constant 0 : index
    %73 = vector.load %arg4[%c0_7, %c0_8] : memref<1x128xf32, #tpu.memory_space<vmem>>, vector<1x128xf32>
    %74 = vector.broadcast %73 : vector<1x128xf32> to vector<384x128xf32>
    %75 = arith.addf %72, %74 : vector<384x128xf32>
    %76 = vector.shape_cast %75 : vector<384x128xf32> to vector<2x8x24x128xf32>
    %c0_9 = arith.constant 0 : index
    %c0_10 = arith.constant 0 : index
    %c0_11 = arith.constant 0 : index
    %c0_12 = arith.constant 0 : index
    %77 = vector.load %arg5[%c0_9, %c0_10, %c0_11, %c0_12] : memref<2x8x24x128xf32, #tpu.memory_space<vmem>>, vector<2x8x24x128xf32>
    tpu.vector_store %arg5[%c0_9, %c0_10, %c0_11, %c0_12], %76 {strides = array<i32>} : memref<2x8x24x128xf32, #tpu.memory_space<vmem>>, vector<2x8x24x128xf32>,
    return
  }
  func.func @transform_0(%arg0: i32) -> (i32, i32, i32, i32) {
    %c0_i32 = arith.constant 0 : i32
    %c0_i32_0 = arith.constant 0 : i32
    %c0_i32_1 = arith.constant 0 : i32
    %c0_i32_2 = arith.constant 0 : i32
    return %arg0, %c0_i32, %c0_i32_0, %c0_i32_1 : i32, i32, i32, i32
  }
  func.func @transform_1(%arg0: i32) -> (i32, i32) {
    %c0_i32 = arith.constant 0 : i32
    %c0_i32_0 = arith.constant 0 : i32
    %c0_i32_1 = arith.constant 0 : i32
    return %c0_i32, %c0_i32_0 : i32, i32
  }
  func.func @transform_2(%arg0: i32) -> (i32, i32) {
    %c0_i32 = arith.constant 0 : i32
    %c0_i32_0 = arith.constant 0 : i32
    %c0_i32_1 = arith.constant 0 : i32
    return %c0_i32, %c0_i32_0 : i32, i32
  }
  func.func @transform_3(%arg0: i32) -> (i32, i32) {
    %c0_i32 = arith.constant 0 : i32
    %c0_i32_0 = arith.constant 0 : i32
    %c0_i32_1 = arith.constant 0 : i32
    return %c0_i32, %c0_i32_0 : i32, i32
  }
  func.func @transform_4(%arg0: i32) -> (i32, i32, i32, i32) {
    %c0_i32 = arith.constant 0 : i32
    %c0_i32_0 = arith.constant 0 : i32
    %c0_i32_1 = arith.constant 0 : i32
    %c0_i32_2 = arith.constant 0 : i32
    return %arg0, %c0_i32, %c0_i32_0, %c0_i32_1 : i32, i32, i32, i32
  }
}

</mosaic_0001>

<llo_original>
// kernel: tpu_custom_call.1
$region0: #{tpu_custom_call.1}
  #allocation0 [shape = 'u32[]', space=smem, size = 0x4, offset = 0x4, fixed_abs, tag = 'smem constant byte address 0x4 - core index']
  #allocation1 [shape = 'u32[144,128]{1,0:T(1,128)}', space=vmem, size = 0x12000, scoped, tag = 'internal scratch']
  %s0 = inlined_call_operand.hbm [shape: f32[4,10,24,128], index: 0, kind: input, shape index: {}]
  %s1 = inlined_call_operand.hbm [shape: f32[9,128], index: 1, kind: input, shape index: {}]
  %s2 = inlined_call_operand.hbm [shape: f32[128,128], index: 2, kind: input, shape index: {}]
  %s3 = inlined_call_operand.vmem [shape: f32[1,128], index: 3, kind: input, shape index: {}]
  %s4 = inlined_call_operand.hbm [shape: f32[4,8,24,128], index: 4, kind: output, shape index: {}]
  %s5 = sld [smem:[#allocation0]]
  $region61: #{tpu_custom_call.1} parent=0
    _
  %s7 = ssub.s32 1, %s5
  %s8 = scalar_select 0, %s7, %s5
  $region1: #{tpu_custom_call.1} parent=0
    #allocation2 [shape = 'u8[491520]{0}', space=vmem, size = 0x78000, scoped, tag = 'input window, operand 0']
    #allocation3 [shape = 's32[2]{0}', space=sflag, size = 0x8, scoped, tag = 'scoped memory for tpu_custom_call.1']
    #allocation4 [shape = 's32[2]{0}', space=sflag, size = 0x8, scoped, tag = 'scoped memory for tpu_custom_call.1']
    #allocation5 [shape = 'u8[8192]{0}', space=vmem, size = 0x2000, scoped, tag = 'input window, operand 1, single buffered']
    #allocation6 [shape = 's32[1]{0}', space=sflag, size = 0x4, scoped, tag = 'scoped memory for tpu_custom_call.1']
    #allocation7 [shape = 'u8[65536]{0}', space=vmem, size = 0x10000, scoped, tag = 'input window, operand 2, single buffered']
    #allocation8 [shape = 'u8[393216]{0}', space=vmem, size = 0x60000, scoped, tag = 'output window, operand 0']
    %9 = vsyncpa [#allocation3], 0
    %s10 = scalar_lea.sflag [#allocation3], 1
    %11 = vsyncpa %s10, 0
    %12 = vsyncpa [#allocation6], 0
    %13 = vsyncpa [#allocation4], 0
    %s14 = scalar_lea.sflag [#allocation4], 1
    %15 = vsyncpa %s14, 0
    loop: start=0, step=1, limit=4
    $region2: #{tpu_custom_call.1} parent=1 // loop_pre_header
      _
    $region3: #{tpu_custom_call.1} parent=1 // loop_header
      %s17 = sphi 0, %s21
      %p18 = scmp.ge.s32.totalorder %s17, 4
      %s27 = sphi 0, %s29
      %s30 = sphi 0, %s27
      %s31 = sphi 0, %s30
      %s47 = sphi 0, %s31
      %s51 = sphi 0, %s51
      %s53 = sphi 0, %s51
      %s54 = sphi 0, %s53
      %s68 = sphi 0, %s54
      %s72 = sphi 0, %s72
      %s74 = sphi 0, %s72
      %s75 = sphi 0, %s74
      %s89 = sphi 0, %s75
      %s93 = sphi 0, %s93
      %s95 = sphi 0, %s93
      %s96 = sphi 0, %s95
      %s110 = sphi 0, %s96
      %s116 = sphi 0, %s118
      %s119 = sphi 0, %s116
      %s120 = sphi 0, %s119
      %s136 = sphi 0, %s120
    $region4: #{tpu_custom_call.1} parent=1 // loop_header_branch
      %20 = sbr.rel (%p18) target = $region8
    $region5: #{tpu_custom_call.1} parent=1 // loop_body
      %s22 = ssub.s32 %s17, 1
      %s23 = ssub.s32 %s17, 2
      %s24 = sadd.s32 %s17, 1
      %s25 = ssub.s32 %s17, %s24
      %p26 = scmp.eq.s32.totalorder %s25, 0
      %s28 = sadd.s32 %s27, 1
      %s29 = scalar_select %p26, %s27, %s28
      %p32 = pneg %p26
      %p33 = scmp.eq.s32.totalorder %s17, 1
      %p34 = por %p32, %p33
      %p35 = scmp.ne.s32.totalorder %s27, %s30
      %p36 = scmp.eq.s32.totalorder %s17, 0
      %p37 = por %p35, %p36
      %p38 = scmp.ne.s32.totalorder %s27, %s30
      %p39 = scmp.eq.s32.totalorder %s22, 1
      %p40 = por %p38, %p39
      %p41 = scmp.ne.s32.totalorder %s30, %s31
      %p42 = scmp.eq.s32.totalorder %s22, 0
      %p43 = por %p41, %p42
      %p44 = scmp.ne.s32.totalorder %s30, %s31
      %p45 = scmp.eq.s32.totalorder %s23, 1
      %p46 = por %p44, %p45
      %p48 = scmp.ne.s32.totalorder %s31, %s47
      %p49 = scmp.eq.s32.totalorder %s23, 0
      %p50 = por %p48, %p49
      %s52 = sadd.s32 %s51, 1
      %p55 = scmp.eq.s32.totalorder %s17, 1
      %p56 = scmp.ne.s32.totalorder %s51, %s53
      %p57 = scmp.eq.s32.totalorder %s17, 0
      %p58 = por %p56, %p57
      %p59 = scmp.ne.s32.totalorder %s51, %s53
      %p60 = scmp.eq.s32.totalorder %s22, 1
      %p61 = por %p59, %p60
      %p62 = scmp.ne.s32.totalorder %s53, %s54
      %p63 = scmp.eq.s32.totalorder %s22, 0
      %p64 = por %p62, %p63
      %p65 = scmp.ne.s32.totalorder %s53, %s54
      %p66 = scmp.eq.s32.totalorder %s23, 1
      %p67 = por %p65, %p66
      %p69 = scmp.ne.s32.totalorder %s54, %s68
      %p70 = scmp.eq.s32.totalorder %s23, 0
      %p71 = por %p69, %p70
      %s73 = sadd.s32 %s72, 1
      %p76 = scmp.eq.s32.totalorder %s17, 1
      %p77 = scmp.ne.s32.totalorder %s72, %s74
      %p78 = scmp.eq.s32.totalorder %s17, 0
      %p79 = por %p77, %p78
      %p80 = scmp.ne.s32.totalorder %s72, %s74
      %p81 = scmp.eq.s32.totalorder %s22, 1
      %p82 = por %p80, %p81
      %p83 = scmp.ne.s32.totalorder %s74, %s75
      %p84 = scmp.eq.s32.totalorder %s22, 0
      %p85 = por %p83, %p84
      %p86 = scmp.ne.s32.totalorder %s74, %s75
      %p87 = scmp.eq.s32.totalorder %s23, 1
      %p88 = por %p86, %p87
      %p90 = scmp.ne.s32.totalorder %s75, %s89
      %p91 = scmp.eq.s32.totalorder %s23, 0
      %p92 = por %p90, %p91
      %s94 = sadd.s32 %s93, 1
      %p97 = scmp.eq.s32.totalorder %s17, 1
      %p98 = scmp.ne.s32.totalorder %s93, %s95
      %p99 = scmp.eq.s32.totalorder %s17, 0
      %p100 = por %p98, %p99
      %p101 = scmp.ne.s32.totalorder %s93, %s95
      %p102 = scmp.eq.s32.totalorder %s22, 1
      %p103 = por %p101, %p102
      %p104 = scmp.ne.s32.totalorder %s95, %s96
      %p105 = scmp.eq.s32.totalorder %s22, 0
      %p106 = por %p104, %p105
      %p107 = scmp.ne.s32.totalorder %s95, %s96
      %p108 = scmp.eq.s32.totalorder %s23, 1
      %p109 = por %p107, %p108
      %p111 = scmp.ne.s32.totalorder %s96, %s110
      %p112 = scmp.eq.s32.totalorder %s23, 0
      %p113 = por %p111, %p112
      %s114 = ssub.s32 %s17, %s24
      %p115 = scmp.eq.s32.totalorder %s114, 0
      %s117 = sadd.s32 %s116, 1
      %s118 = scalar_select %p115, %s116, %s117
      %p121 = pneg %p115
      %p122 = scmp.eq.s32.totalorder %s17, 1
      %p123 = por %p121, %p122
      %p124 = scmp.ne.s32.totalorder %s116, %s119
      %p125 = scmp.eq.s32.totalorder %s17, 0
      %p126 = por %p124, %p125
      %p127 = scmp.ne.s32.totalorder %s116, %s119
      %p128 = scmp.eq.s32.totalorder %s22, 1
      %p129 = por %p127, %p128
      %p130 = scmp.ne.s32.totalorder %s119, %s120
      %p131 = scmp.eq.s32.totalorder %s22, 0
      %p132 = por %p130, %p131
      %p133 = scmp.ne.s32.totalorder %s119, %s120
      %p134 = scmp.eq.s32.totalorder %s23, 1
      %p135 = por %p133, %p134
      %p137 = scmp.ne.s32.totalorder %s120, %s136
      %p138 = scmp.eq.s32.totalorder %s23, 0
      %p139 = por %p137, %p138
      %p140 = scmp.le.s32.totalorder 1, %s17
      %p141 = scmp.lt.s32.totalorder %s17, 3
      %p142 = pnand %p140, %p141
      %p143 = pneg %p142
      // Predicated region
      $region9: #{tpu_custom_call.1} parent=5 // pred_check
        _
      $region10: #{tpu_custom_call.1} parent=5 // pred_check_branch
        %145 = sbr.rel (%p142) target = $region12
      $region11: #{tpu_custom_call.1} parent=5 // pred_region
        %s146 = ssub.s32 %s17, 1
        // Predicated region
        $region13: #{tpu_custom_call.1} parent=11 // pred_check
          %p147 = pneg %p64
        $region14: #{tpu_custom_call.1} parent=11 // pred_check_branch
          %149 = sbr.rel (%p147) target = $region16
        $region15: #{tpu_custom_call.1} parent=11 // pred_region
          %s151 = ssub.s32 256, 256
          %152 = vsyncadd [#allocation6], %s151
          %s153 = sshll.u32 [#allocation5], 4
          %s154 = int_to_ptr.vmem [resolvable:$true] %s153
          %159 = dma.hbm_to_vmem [thread:$0]  %s1, 256, %s154, [#allocation6], 128, 128, 8
        $region16: #{tpu_custom_call.1} parent=11 // pred_fallthru
          _
        // Predicated region
        $region17: #{tpu_custom_call.1} parent=11 // pred_check
          %p160 = pneg %p85
        $region18: #{tpu_custom_call.1} parent=11 // pred_check_branch
          %162 = sbr.rel (%p160) target = $region20
        $region19: #{tpu_custom_call.1} parent=11 // pred_region
          %s164 = ssub.s32 2048, 2048
          %165 = vsyncadd [#allocation6], %s164
          %s166 = sshll.u32 [#allocation7], 4
          %s167 = int_to_ptr.vmem [resolvable:$true] %s166
          %172 = dma.hbm_to_vmem [thread:$0]  %s2, 2048, %s167, [#allocation6], 128, 128, 8
        $region20: #{tpu_custom_call.1} parent=11 // pred_fallthru
          _
        // Predicated region
        $region21: #{tpu_custom_call.1} parent=11 // pred_check
          %p173 = pneg %p106
        $region22: #{tpu_custom_call.1} parent=11 // pred_check_branch
          %175 = sbr.rel (%p173) target = $region24
        $region23: #{tpu_custom_call.1} parent=11 // pred_region
          _
        $region24: #{tpu_custom_call.1} parent=11 // pred_fallthru
          _
      $region12: #{tpu_custom_call.1} parent=5 // pred_fallthru
        _
      %p176 = scmp.lt.s32.totalorder %s17, 2
      // Predicated region
      $region25: #{tpu_custom_call.1} parent=5 // pred_check
        %p177 = pneg %p176
      $region26: #{tpu_custom_call.1} parent=5 // pred_check_branch
        %179 = sbr.rel (%p177) target = $region28
      $region27: #{tpu_custom_call.1} parent=5 // pred_region
        // Predicated region
        $region29: #{tpu_custom_call.1} parent=27 // pred_check
          %p180 = pneg %p37
        $region30: #{tpu_custom_call.1} parent=27 // pred_check_branch
          %182 = sbr.rel (%p180) target = $region32
        $region31: #{tpu_custom_call.1} parent=27 // pred_region
          %s183 = sand.u32 %s27, 1
          %s184 = scalar_lea.sflag [#allocation3], %s183
          %s185 = sand.u32 %s27, 1
          %s186 = smul.addr %s185, 480
          %s187 = scalar_lea.vmem [#allocation2], %s186
          %s188 = smul.u32 2, %s17
          %s190 = ssub.s32 7680, 7680
          %191 = vsyncadd %s184, %s190
          %s192 = smul.addr %s188, 30
          %s193 = smul.addr %s192, 128
          %s194 = scalar_lea.hbm %s0, %s193
          %s195 = sshll.u32 %s187, 4
          %s196 = int_to_ptr.vmem [resolvable:$true] %s195
          %201 = dma.hbm_to_vmem [thread:$0]  %s194, 7680, %s196, %s184, 128, 128, 8
        $region32: #{tpu_custom_call.1} parent=27 // pred_fallthru
          _
      $region28: #{tpu_custom_call.1} parent=5 // pred_fallthru
        _
      %p202 = scmp.le.s32.totalorder 1, %s17
      %p203 = scmp.lt.s32.totalorder %s17, 3
      %p204 = pnand %p202, %p203
      %p205 = pneg %p204
      // Predicated region
      $region33: #{tpu_custom_call.1} parent=5 // pred_check
        _
      $region34: #{tpu_custom_call.1} parent=5 // pred_check_branch
        %207 = sbr.rel (%p204) target = $region36
      $region35: #{tpu_custom_call.1} parent=5 // pred_region
        %s208 = ssub.s32 %s17, 1
        %s209 = sand.u32 %s30, 1
        %s210 = scalar_lea.sflag [#allocation3], %s209
        %s211 = sand.u32 %s30, 1
        %s212 = smul.addr %s211, 480
        %s213 = scalar_lea.vmem [#allocation2], %s212
        // Predicated region
        $region37: #{tpu_custom_call.1} parent=35 // pred_check
          %p214 = pneg %p43
        $region38: #{tpu_custom_call.1} parent=35 // pred_check_branch
          %216 = sbr.rel (%p214) target = $region40
        $region39: #{tpu_custom_call.1} parent=35 // pred_region
          %217 = dma.done %s210, 7680
        $region40: #{tpu_custom_call.1} parent=35 // pred_fallthru
          _
        // Predicated region
        $region41: #{tpu_custom_call.1} parent=35 // pred_check
          %p218 = pneg %p64
        $region42: #{tpu_custom_call.1} parent=35 // pred_check_branch
          %220 = sbr.rel (%p218) target = $region44
        $region43: #{tpu_custom_call.1} parent=35 // pred_region
          %221 = dma.done [#allocation6], 256
        $region44: #{tpu_custom_call.1} parent=35 // pred_fallthru
          _
        // Predicated region
        $region45: #{tpu_custom_call.1} parent=35 // pred_check
          %p222 = pneg %p85
        $region46: #{tpu_custom_call.1} parent=35 // pred_check_branch
          %224 = sbr.rel (%p222) target = $region48
        $region47: #{tpu_custom_call.1} parent=35 // pred_region
          %225 = dma.done [#allocation6], 2048
        $region48: #{tpu_custom_call.1} parent=35 // pred_fallthru
          _
        %s226 = sand.u32 %s30, 1
        %s227 = scalar_lea.sflag [#allocation3], %s226
        %s228 = sand.u32 %s30, 1
        %s229 = smul.addr %s228, 480
        %s230 = scalar_lea.vmem [#allocation2], %s229
        %p231 = pneg %p43
        %p232 = pneg %p40
        %p233 = pneg %p64
        %p234 = pneg %p61
        %p235 = pneg %p85
        %p236 = pneg %p82
        %p237 = pneg %p106
        %p238 = pneg %p103
        %p239 = pneg %p132
        %p240 = pneg %p129
        %s241 = sand.u32 %s119, 1
        %s242 = scalar_lea.sflag [#allocation4], %s241
        %s243 = sand.u32 %s119, 1
        %s244 = smul.addr %s243, 384
        %s245 = scalar_lea.vmem [#allocation8], %s244
        %s246 = smul.u32 2, %s22
        %s247 = smul.u32 2, %s22
        %v248 = vld [vmem:[#allocation5] sm:$0xff]
        %v249 = vld [vmem:[#allocation5 + $0x8] sm:$0x1]
        %v250 = vld [vmem:[%s213] sm:$0xff]
        %v251 = vld [vmem:[%s213 + $0x8] sm:$0xff]
        %v252 = vld [vmem:[%s213 + $0x10] sm:$0xff]
        %v253 = vld [vmem:[%s213 + $0x18] sm:$0xff]
        %v254 = vld [vmem:[%s213 + $0x20] sm:$0xff]
        %v255 = vld [vmem:[%s213 + $0x28] sm:$0xff]
        %v256 = vld [vmem:[%s213 + $0x30] sm:$0xff]
        %v257 = vld [vmem:[%s213 + $0x38] sm:$0xff]
        %v258 = vld [vmem:[%s213 + $0x40] sm:$0xff]
        %v259 = vld [vmem:[%s213 + $0x48] sm:$0xff]
        %v260 = vld [vmem:[%s213 + $0x50] sm:$0xff]
        %v261 = vld [vmem:[%s213 + $0x58] sm:$0xff]
        %v262 = vld [vmem:[%s213 + $0x60] sm:$0xff]
        %v263 = vld [vmem:[%s213 + $0x68] sm:$0xff]
        %v264 = vld [vmem:[%s213 + $0x70] sm:$0xff]
        %v265 = vld [vmem:[%s213 + $0x78] sm:$0xff]
        %v266 = vld [vmem:[%s213 + $0x80] sm:$0xff]
        %v267 = vld [vmem:[%s213 + $0x88] sm:$0xff]
        %v268 = vld [vmem:[%s213 + $0x90] sm:$0xff]
        %v269 = vld [vmem:[%s213 + $0x98] sm:$0xff]
        %v270 = vld [vmem:[%s213 + $0xa0] sm:$0xff]
        %v271 = vld [vmem:[%s213 + $0xa8] sm:$0xff]
        %v272 = vld [vmem:[%s213 + $0xb0] sm:$0xff]
        %v273 = vld [vmem:[%s213 + $0xb8] sm:$0xff]
        %v274 = vld [vmem:[%s213 + $0xc0] sm:$0xff]
        %v275 = vld [vmem:[%s213 + $0xc8] sm:$0xff]
        %v276 = vld [vmem:[%s213 + $0xd0] sm:$0xff]
        %v277 = vld [vmem:[%s213 + $0xd8] sm:$0xff]
        %v278 = vld [vmem:[%s213 + $0xe0] sm:$0xff]
        %v279 = vld [vmem:[%s213 + $0xe8] sm:$0xff]
        %v280 = vld [vmem:[%s213 + $0xf0] sm:$0xff]
        %v281 = vld [vmem:[%s213 + $0xf8] sm:$0xff]
        %v282 = vld [vmem:[%s213 + $0x100] sm:$0xff]
        %v283 = vld [vmem:[%s213 + $0x108] sm:$0xff]
        %v284 = vld [vmem:[%s213 + $0x110] sm:$0xff]
        %v285 = vld [vmem:[%s213 + $0x118] sm:$0xff]
        %v286 = vld [vmem:[%s213 + $0x120] sm:$0xff]
        %v287 = vld [vmem:[%s213 + $0x128] sm:$0xff]
        %v288 = vld [vmem:[%s213 + $0x130] sm:$0xff]
        %v289 = vld [vmem:[%s213 + $0x138] sm:$0xff]
        %v290 = vld [vmem:[%s213 + $0x140] sm:$0xff]
        %v291 = vld [vmem:[%s213 + $0x148] sm:$0xff]
        %v292 = vld [vmem:[%s213 + $0x150] sm:$0xff]
        %v293 = vld [vmem:[%s213 + $0x158] sm:$0xff]
        %v294 = vld [vmem:[%s213 + $0x160] sm:$0xff]
        %v295 = vld [vmem:[%s213 + $0x168] sm:$0xff]
        %v296 = vld [vmem:[%s213 + $0x170] sm:$0xff]
        %v297 = vld [vmem:[%s213 + $0x178] sm:$0xff]
        %v298 = vld [vmem:[%s213 + $0x180] sm:$0xff]
        %v299 = vld [vmem:[%s213 + $0x188] sm:$0xff]
        %v300 = vld [vmem:[%s213 + $0x190] sm:$0xff]
        %v301 = vld [vmem:[%s213 + $0x198] sm:$0xff]
        %v302 = vld [vmem:[%s213 + $0x1a0] sm:$0xff]
        %v303 = vld [vmem:[%s213 + $0x1a8] sm:$0xff]
        %v304 = vld [vmem:[%s213 + $0x1b0] sm:$0xff]
        %v305 = vld [vmem:[%s213 + $0x1b8] sm:$0xff]
        %v306 = vld [vmem:[%s213 + $0x1c0] sm:$0xff]
        %v307 = vld [vmem:[%s213 + $0x1c8] sm:$0xff]
        %v308 = vld [vmem:[%s213 + $0x1d0] sm:$0xff]
        %v309 = vld [vmem:[%s213 + $0x1d8] sm:$0xff]
        %v310 = vrot.slane %v250, 1
        %v311 = vrot.slane %v251, 1
        %v312 = vrot.slane %v252, 1
        %v313 = vrot.slane %v253, 1
        %v314 = vrot.slane %v254, 1
        %v315 = vrot.slane %v255, 1
        %v316 = vrot.slane %v256, 1
        %v317 = vrot.slane %v257, 1
        %v318 = vrot.slane %v258, 1
        %v319 = vrot.slane %v259, 1
        %v320 = vrot.slane %v260, 1
        %v321 = vrot.slane %v261, 1
        %v322 = vrot.slane %v262, 1
        %v323 = vrot.slane %v263, 1
        %v324 = vrot.slane %v264, 1
        %v325 = vrot.slane %v265, 1
        %v326 = vrot.slane %v266, 1
        %v327 = vrot.slane %v267, 1
        %v328 = vrot.slane %v268, 1
        %v329 = vrot.slane %v269, 1
        %v330 = vrot.slane %v270, 1
        %v331 = vrot.slane %v271, 1
        %v332 = vrot.slane %v272, 1
        %v333 = vrot.slane %v273, 1
        %v334 = vrot.slane %v274, 1
        %v335 = vrot.slane %v275, 1
        %v336 = vrot.slane %v276, 1
        %v337 = vrot.slane %v277, 1
        %v338 = vrot.slane %v278, 1
        %v339 = vrot.slane %v279, 1
        %v340 = vrot.slane %v280, 1
        %v341 = vrot.slane %v281, 1
        %v342 = vrot.slane %v282, 1
        %v343 = vrot.slane %v283, 1
        %v344 = vrot.slane %v284, 1
        %v345 = vrot.slane %v285, 1
        %v346 = vrot.slane %v286, 1
        %v347 = vrot.slane %v287, 1
        %v348 = vrot.slane %v288, 1
        %v349 = vrot.slane %v289, 1
        %v350 = vrot.slane %v290, 1
        %v351 = vrot.slane %v291, 1
        %v352 = vrot.slane %v292, 1
        %v353 = vrot.slane %v293, 1
        %v354 = vrot.slane %v294, 1
        %v355 = vrot.slane %v295, 1
        %v356 = vrot.slane %v296, 1
        %v357 = vrot.slane %v297, 1
        %v358 = vrot.slane %v298, 1
        %v359 = vrot.slane %v299, 1
        %v360 = vrot.slane %v300, 1
        %v361 = vrot.slane %v301, 1
        %v362 = vrot.slane %v302, 1
        %v363 = vrot.slane %v303, 1
        %v364 = vrot.slane %v304, 1
        %v365 = vrot.slane %v305, 1
        %v366 = vrot.slane %v306, 1
        %v367 = vrot.slane %v307, 1
        %v368 = vrot.slane %v308, 1
        %v369 = vrot.slane %v309, 1
        %v370 = vlaneseq
        %v371 = vshrl.u32 %v370, 7
        %vm372 = vcmp.lt.s32.totalorder %v371, 7
        %v373 = vsel %vm372, %v368, %v369
        %v374 = vsel %vm372, %v367, %v368
        %v375 = vsel %vm372, %v366, %v367
        %v376 = vsel %vm372, %v365, %v366
        %v377 = vsel %vm372, %v364, %v365
        %v378 = vsel %vm372, %v363, %v364
        %v379 = vsel %vm372, %v362, %v363
        %v380 = vsel %vm372, %v361, %v362
        %v381 = vsel %vm372, %v360, %v361
        %v382 = vsel %vm372, %v359, %v360
        %v383 = vsel %vm372, %v358, %v359
        %v384 = vsel %vm372, %v357, %v358
        %v385 = vsel %vm372, %v356, %v357
        %v386 = vsel %vm372, %v355, %v356
        %v387 = vsel %vm372, %v354, %v355
        %v388 = vsel %vm372, %v353, %v354
        %v389 = vsel %vm372, %v352, %v353
        %v390 = vsel %vm372, %v351, %v352
        %v391 = vsel %vm372, %v350, %v351
        %v392 = vsel %vm372, %v349, %v350
        %v393 = vsel %vm372, %v348, %v349
        %v394 = vsel %vm372, %v347, %v348
        %v395 = vsel %vm372, %v346, %v347
        %v396 = vsel %vm372, %v345, %v346
        %v397 = vsel %vm372, %v344, %v345
        %v398 = vsel %vm372, %v343, %v344
        %v399 = vsel %vm372, %v342, %v343
        %v400 = vsel %vm372, %v341, %v342
        %v401 = vsel %vm372, %v340, %v341
        %v402 = vsel %vm372, %v339, %v340
        %v403 = vsel %vm372, %v338, %v339
        %v404 = vsel %vm372, %v337, %v338
        %v405 = vsel %vm372, %v336, %v337
        %v406 = vsel %vm372, %v335, %v336
        %v407 = vsel %vm372, %v334, %v335
        %v408 = vsel %vm372, %v333, %v334
        %v409 = vsel %vm372, %v332, %v333
        %v410 = vsel %vm372, %v331, %v332
        %v411 = vsel %vm372, %v330, %v331
        %v412 = vsel %vm372, %v329, %v330
        %v413 = vsel %vm372, %v328, %v329
        %v414 = vsel %vm372, %v327, %v328
        %v415 = vsel %vm372, %v326, %v327
        %v416 = vsel %vm372, %v325, %v326
        %v417 = vsel %vm372, %v324, %v325
        %v418 = vsel %vm372, %v323, %v324
        %v419 = vsel %vm372, %v322, %v323
        %v420 = vsel %vm372, %v321, %v322
        %v421 = vsel %vm372, %v320, %v321
        %v422 = vsel %vm372, %v319, %v320
        %v423 = vsel %vm372, %v318, %v319
        %v424 = vsel %vm372, %v317, %v318
        %v425 = vsel %vm372, %v316, %v317
        %v426 = vsel %vm372, %v315, %v316
        %v427 = vsel %vm372, %v314, %v315
        %v428 = vsel %vm372, %v313, %v314
        %v429 = vsel %vm372, %v312, %v313
        %v430 = vsel %vm372, %v311, %v312
        %v431 = vsel %vm372, %v310, %v311
        %v432 = vsel %vm372, %v369, %v310
        %v433 = vrot.slane %v250, 2
        %v434 = vrot.slane %v251, 2
        %v435 = vrot.slane %v252, 2
        %v436 = vrot.slane %v253, 2
        %v437 = vrot.slane %v254, 2
        %v438 = vrot.slane %v255, 2
        %v439 = vrot.slane %v256, 2
        %v440 = vrot.slane %v257, 2
        %v441 = vrot.slane %v258, 2
        %v442 = vrot.slane %v259, 2
        %v443 = vrot.slane %v260, 2
        %v444 = vrot.slane %v261, 2
        %v445 = vrot.slane %v262, 2
        %v446 = vrot.slane %v263, 2
        %v447 = vrot.slane %v264, 2
        %v448 = vrot.slane %v265, 2
        %v449 = vrot.slane %v266, 2
        %v450 = vrot.slane %v267, 2
        %v451 = vrot.slane %v268, 2
        %v452 = vrot.slane %v269, 2
        %v453 = vrot.slane %v270, 2
        %v454 = vrot.slane %v271, 2
        %v455 = vrot.slane %v272, 2
        %v456 = vrot.slane %v273, 2
        %v457 = vrot.slane %v274, 2
        %v458 = vrot.slane %v275, 2
        %v459 = vrot.slane %v276, 2
        %v460 = vrot.slane %v277, 2
        %v461 = vrot.slane %v278, 2
        %v462 = vrot.slane %v279, 2
        %v463 = vrot.slane %v280, 2
        %v464 = vrot.slane %v281, 2
        %v465 = vrot.slane %v282, 2
        %v466 = vrot.slane %v283, 2
        %v467 = vrot.slane %v284, 2
        %v468 = vrot.slane %v285, 2
        %v469 = vrot.slane %v286, 2
        %v470 = vrot.slane %v287, 2
        %v471 = vrot.slane %v288, 2
        %v472 = vrot.slane %v289, 2
        %v473 = vrot.slane %v290, 2
        %v474 = vrot.slane %v291, 2
        %v475 = vrot.slane %v292, 2
        %v476 = vrot.slane %v293, 2
        %v477 = vrot.slane %v294, 2
        %v478 = vrot.slane %v295, 2
        %v479 = vrot.slane %v296, 2
        %v480 = vrot.slane %v297, 2
        %v481 = vrot.slane %v298, 2
        %v482 = vrot.slane %v299, 2
        %v483 = vrot.slane %v300, 2
        %v484 = vrot.slane %v301, 2
        %v485 = vrot.slane %v302, 2
        %v486 = vrot.slane %v303, 2
        %v487 = vrot.slane %v304, 2
        %v488 = vrot.slane %v305, 2
        %v489 = vrot.slane %v306, 2
        %v490 = vrot.slane %v307, 2
        %v491 = vrot.slane %v308, 2
        %v492 = vrot.slane %v309, 2
        %vm493 = vcmp.lt.s32.totalorder %v371, 6
        %v494 = vsel %vm493, %v491, %v492
        %v495 = vsel %vm493, %v490, %v491
        %v496 = vsel %vm493, %v489, %v490
        %v497 = vsel %vm493, %v488, %v489
        %v498 = vsel %vm493, %v487, %v488
        %v499 = vsel %vm493, %v486, %v487
        %v500 = vsel %vm493, %v485, %v486
        %v501 = vsel %vm493, %v484, %v485
        %v502 = vsel %vm493, %v483, %v484
        %v503 = vsel %vm493, %v482, %v483
        %v504 = vsel %vm493, %v481, %v482
        %v505 = vsel %vm493, %v480, %v481
        %v506 = vsel %vm493, %v479, %v480
        %v507 = vsel %vm493, %v478, %v479
        %v508 = vsel %vm493, %v477, %v478
        %v509 = vsel %vm493, %v476, %v477
        %v510 = vsel %vm493, %v475, %v476
        %v511 = vsel %vm493, %v474, %v475
        %v512 = vsel %vm493, %v473, %v474
        %v513 = vsel %vm493, %v472, %v473
        %v514 = vsel %vm493, %v471, %v472
        %v515 = vsel %vm493, %v470, %v471
        %v516 = vsel %vm493, %v469, %v470
        %v517 = vsel %vm493, %v468, %v469
        %v518 = vsel %vm493, %v467, %v468
        %v519 = vsel %vm493, %v466, %v467
        %v520 = vsel %vm493, %v465, %v466
        %v521 = vsel %vm493, %v464, %v465
        %v522 = vsel %vm493, %v463, %v464
        %v523 = vsel %vm493, %v462, %v463
        %v524 = vsel %vm493, %v461, %v462
        %v525 = vsel %vm493, %v460, %v461
        %v526 = vsel %vm493, %v459, %v460
        %v527 = vsel %vm493, %v458, %v459
        %v528 = vsel %vm493, %v457, %v458
        %v529 = vsel %vm493, %v456, %v457
        %v530 = vsel %vm493, %v455, %v456
        %v531 = vsel %vm493, %v454, %v455
        %v532 = vsel %vm493, %v453, %v454
        %v533 = vsel %vm493, %v452, %v453
        %v534 = vsel %vm493, %v451, %v452
        %v535 = vsel %vm493, %v450, %v451
        %v536 = vsel %vm493, %v449, %v450
        %v537 = vsel %vm493, %v448, %v449
        %v538 = vsel %vm493, %v447, %v448
        %v539 = vsel %vm493, %v446, %v447
        %v540 = vsel %vm493, %v445, %v446
        %v541 = vsel %vm493, %v444, %v445
        %v542 = vsel %vm493, %v443, %v444
        %v543 = vsel %vm493, %v442, %v443
        %v544 = vsel %vm493, %v441, %v442
        %v545 = vsel %vm493, %v440, %v441
        %v546 = vsel %vm493, %v439, %v440
        %v547 = vsel %vm493, %v438, %v439
        %v548 = vsel %vm493, %v437, %v438
        %v549 = vsel %vm493, %v436, %v437
        %v550 = vsel %vm493, %v435, %v436
        %v551 = vsel %vm493, %v434, %v435
        %v552 = vsel %vm493, %v433, %v434
        %v553 = vsel %vm493, %v492, %v433
        %v554 = vlaneseq
        %v555 = vshrl.u32 %v554, 7
        %v556 = vsub.s32 0, %v555
        %v557 = vrot.slane %v248, %v556
        %v558 = vmul.f32 %v250, %v557
        %v559 = vmul.f32 %v251, %v557
        %v560 = vmul.f32 %v252, %v557
        %v561 = vmul.f32 %v253, %v557
        %v562 = vmul.f32 %v254, %v557
        %v563 = vmul.f32 %v255, %v557
        %v564 = vmul.f32 %v256, %v557
        %v565 = vmul.f32 %v257, %v557
        %v566 = vmul.f32 %v258, %v557
        %v567 = vmul.f32 %v259, %v557
        %v568 = vmul.f32 %v260, %v557
        %v569 = vmul.f32 %v261, %v557
        %v570 = vmul.f32 %v262, %v557
        %v571 = vmul.f32 %v263, %v557
        %v572 = vmul.f32 %v264, %v557
        %v573 = vmul.f32 %v265, %v557
        %v574 = vmul.f32 %v266, %v557
        %v575 = vmul.f32 %v267, %v557
        %v576 = vmul.f32 %v268, %v557
        %v577 = vmul.f32 %v269, %v557
        %v578 = vmul.f32 %v270, %v557
        %v579 = vmul.f32 %v271, %v557
        %v580 = vmul.f32 %v272, %v557
        %v581 = vmul.f32 %v273, %v557
        %v582 = vmul.f32 %v280, %v557
        %v583 = vmul.f32 %v281, %v557
        %v584 = vmul.f32 %v282, %v557
        %v585 = vmul.f32 %v283, %v557
        %v586 = vmul.f32 %v284, %v557
        %v587 = vmul.f32 %v285, %v557
        %v588 = vmul.f32 %v286, %v557
        %v589 = vmul.f32 %v287, %v557
        %v590 = vmul.f32 %v288, %v557
        %v591 = vmul.f32 %v289, %v557
        %v592 = vmul.f32 %v290, %v557
        %v593 = vmul.f32 %v291, %v557
        %v594 = vmul.f32 %v292, %v557
        %v595 = vmul.f32 %v293, %v557
        %v596 = vmul.f32 %v294, %v557
        %v597 = vmul.f32 %v295, %v557
        %v598 = vmul.f32 %v296, %v557
        %v599 = vmul.f32 %v297, %v557
        %v600 = vmul.f32 %v298, %v557
        %v601 = vmul.f32 %v299, %v557
        %v602 = vmul.f32 %v300, %v557
        %v603 = vmul.f32 %v301, %v557
        %v604 = vmul.f32 %v302, %v557
        %v605 = vmul.f32 %v303, %v557
        %v606 = vlaneseq
        %v607 = vshrl.u32 %v606, 7
        %v608 = vsub.s32 1, %v607
        %v609 = vrot.slane %v248, %v608
        %v610 = vmul.f32 %v431, %v609
        %v611 = vmul.f32 %v430, %v609
        %v612 = vmul.f32 %v429, %v609
        %v613 = vmul.f32 %v428, %v609
        %v614 = vmul.f32 %v427, %v609
        %v615 = vmul.f32 %v426, %v609
        %v616 = vmul.f32 %v425, %v609
        %v617 = vmul.f32 %v424, %v609
        %v618 = vmul.f32 %v423, %v609
        %v619 = vmul.f32 %v422, %v609
        %v620 = vmul.f32 %v421, %v609
        %v621 = vmul.f32 %v420, %v609
        %v622 = vmul.f32 %v419, %v609
        %v623 = vmul.f32 %v418, %v609
        %v624 = vmul.f32 %v417, %v609
        %v625 = vmul.f32 %v416, %v609
        %v626 = vmul.f32 %v415, %v609
        %v627 = vmul.f32 %v414, %v609
        %v628 = vmul.f32 %v413, %v609
        %v629 = vmul.f32 %v412, %v609
        %v630 = vmul.f32 %v411, %v609
        %v631 = vmul.f32 %v410, %v609
        %v632 = vmul.f32 %v409, %v609
        %v633 = vmul.f32 %v408, %v609
        %v634 = vmul.f32 %v401, %v609
        %v635 = vmul.f32 %v400, %v609
        %v636 = vmul.f32 %v399, %v609
        %v637 = vmul.f32 %v398, %v609
        %v638 = vmul.f32 %v397, %v609
        %v639 = vmul.f32 %v396, %v609
        %v640 = vmul.f32 %v395, %v609
        %v641 = vmul.f32 %v394, %v609
        %v642 = vmul.f32 %v393, %v609
        %v643 = vmul.f32 %v392, %v609
        %v644 = vmul.f32 %v391, %v609
        %v645 = vmul.f32 %v390, %v609
        %v646 = vmul.f32 %v389, %v609
        %v647 = vmul.f32 %v388, %v609
        %v648 = vmul.f32 %v387, %v609
        %v649 = vmul.f32 %v386, %v609
        %v650 = vmul.f32 %v385, %v609
        %v651 = vmul.f32 %v384, %v609
        %v652 = vmul.f32 %v383, %v609
        %v653 = vmul.f32 %v382, %v609
        %v654 = vmul.f32 %v381, %v609
        %v655 = vmul.f32 %v380, %v609
        %v656 = vmul.f32 %v379, %v609
        %v657 = vmul.f32 %v378, %v609
        %v658 = vadd.f32 %v558, %v610
        %v659 = vadd.f32 %v559, %v611
        %v660 = vadd.f32 %v560, %v612
        %v661 = vadd.f32 %v561, %v613
        %v662 = vadd.f32 %v562, %v614
        %v663 = vadd.f32 %v563, %v615
        %v664 = vadd.f32 %v564, %v616
        %v665 = vadd.f32 %v565, %v617
        %v666 = vadd.f32 %v566, %v618
        %v667 = vadd.f32 %v567, %v619
        %v668 = vadd.f32 %v568, %v620
        %v669 = vadd.f32 %v569, %v621
        %v670 = vadd.f32 %v570, %v622
        %v671 = vadd.f32 %v571, %v623
        %v672 = vadd.f32 %v572, %v624
        %v673 = vadd.f32 %v573, %v625
        %v674 = vadd.f32 %v574, %v626
        %v675 = vadd.f32 %v575, %v627
        %v676 = vadd.f32 %v576, %v628
        %v677 = vadd.f32 %v577, %v629
        %v678 = vadd.f32 %v578, %v630
        %v679 = vadd.f32 %v579, %v631
        %v680 = vadd.f32 %v580, %v632
        %v681 = vadd.f32 %v581, %v633
        %v682 = vadd.f32 %v582, %v634
        %v683 = vadd.f32 %v583, %v635
        %v684 = vadd.f32 %v584, %v636
        %v685 = vadd.f32 %v585, %v637
        %v686 = vadd.f32 %v586, %v638
        %v687 = vadd.f32 %v587, %v639
        %v688 = vadd.f32 %v588, %v640
        %v689 = vadd.f32 %v589, %v641
        %v690 = vadd.f32 %v590, %v642
        %v691 = vadd.f32 %v591, %v643
        %v692 = vadd.f32 %v592, %v644
        %v693 = vadd.f32 %v593, %v645
        %v694 = vadd.f32 %v594, %v646
        %v695 = vadd.f32 %v595, %v647
        %v696 = vadd.f32 %v596, %v648
        %v697 = vadd.f32 %v597, %v649
        %v698 = vadd.f32 %v598, %v650
        %v699 = vadd.f32 %v599, %v651
        %v700 = vadd.f32 %v600, %v652
        %v701 = vadd.f32 %v601, %v653
        %v702 = vadd.f32 %v602, %v654
        %v703 = vadd.f32 %v603, %v655
        %v704 = vadd.f32 %v604, %v656
        %v705 = vadd.f32 %v605, %v657
        %v706 = vlaneseq
        %v707 = vshrl.u32 %v706, 7
        %v708 = vsub.s32 2, %v707
        %v709 = vrot.slane %v248, %v708
        %v710 = vmul.f32 %v552, %v709
        %v711 = vmul.f32 %v551, %v709
        %v712 = vmul.f32 %v550, %v709
        %v713 = vmul.f32 %v549, %v709
        %v714 = vmul.f32 %v548, %v709
        %v715 = vmul.f32 %v547, %v709
        %v716 = vmul.f32 %v546, %v709
        %v717 = vmul.f32 %v545, %v709
        %v718 = vmul.f32 %v544, %v709
        %v719 = vmul.f32 %v543, %v709
        %v720 = vmul.f32 %v542, %v709
        %v721 = vmul.f32 %v541, %v709
        %v722 = vmul.f32 %v540, %v709
        %v723 = vmul.f32 %v539, %v709
        %v724 = vmul.f32 %v538, %v709
        %v725 = vmul.f32 %v537, %v709
        %v726 = vmul.f32 %v536, %v709
        %v727 = vmul.f32 %v535, %v709
        %v728 = vmul.f32 %v534, %v709
        %v729 = vmul.f32 %v533, %v709
        %v730 = vmul.f32 %v532, %v709
        %v731 = vmul.f32 %v531, %v709
        %v732 = vmul.f32 %v530, %v709
        %v733 = vmul.f32 %v529, %v709
        %v734 = vmul.f32 %v522, %v709
        %v735 = vmul.f32 %v521, %v709
        %v736 = vmul.f32 %v520, %v709
        %v737 = vmul.f32 %v519, %v709
        %v738 = vmul.f32 %v518, %v709
        %v739 = vmul.f32 %v517, %v709
        %v740 = vmul.f32 %v516, %v709
        %v741 = vmul.f32 %v515, %v709
        %v742 = vmul.f32 %v514, %v709
        %v743 = vmul.f32 %v513, %v709
        %v744 = vmul.f32 %v512, %v709
        %v745 = vmul.f32 %v511, %v709
        %v746 = vmul.f32 %v510, %v709
        %v747 = vmul.f32 %v509, %v709
        %v748 = vmul.f32 %v508, %v709
        %v749 = vmul.f32 %v507, %v709
        %v750 = vmul.f32 %v506, %v709
        %v751 = vmul.f32 %v505, %v709
        %v752 = vmul.f32 %v504, %v709
        %v753 = vmul.f32 %v503, %v709
        %v754 = vmul.f32 %v502, %v709
        %v755 = vmul.f32 %v501, %v709
        %v756 = vmul.f32 %v500, %v709
        %v757 = vmul.f32 %v499, %v709
        %v758 = vadd.f32 %v658, %v710
        %v759 = vadd.f32 %v659, %v711
        %v760 = vadd.f32 %v660, %v712
        %v761 = vadd.f32 %v661, %v713
        %v762 = vadd.f32 %v662, %v714
        %v763 = vadd.f32 %v663, %v715
        %v764 = vadd.f32 %v664, %v716
        %v765 = vadd.f32 %v665, %v717
        %v766 = vadd.f32 %v666, %v718
        %v767 = vadd.f32 %v667, %v719
        %v768 = vadd.f32 %v668, %v720
        %v769 = vadd.f32 %v669, %v721
        %v770 = vadd.f32 %v670, %v722
        %v771 = vadd.f32 %v671, %v723
        %v772 = vadd.f32 %v672, %v724
        %v773 = vadd.f32 %v673, %v725
        %v774 = vadd.f32 %v674, %v726
        %v775 = vadd.f32 %v675, %v727
        %v776 = vadd.f32 %v676, %v728
        %v777 = vadd.f32 %v677, %v729
        %v778 = vadd.f32 %v678, %v730
        %v779 = vadd.f32 %v679, %v731
        %v780 = vadd.f32 %v680, %v732
        %v781 = vadd.f32 %v681, %v733
        %v782 = vadd.f32 %v682, %v734
        %v783 = vadd.f32 %v683, %v735
        %v784 = vadd.f32 %v684, %v736
        %v785 = vadd.f32 %v685, %v737
        %v786 = vadd.f32 %v686, %v738
        %v787 = vadd.f32 %v687, %v739
        %v788 = vadd.f32 %v688, %v740
        %v789 = vadd.f32 %v689, %v741
        %v790 = vadd.f32 %v690, %v742
        %v791 = vadd.f32 %v691, %v743
        %v792 = vadd.f32 %v692, %v744
        %v793 = vadd.f32 %v693, %v745
        %v794 = vadd.f32 %v694, %v746
        %v795 = vadd.f32 %v695, %v747
        %v796 = vadd.f32 %v696, %v748
        %v797 = vadd.f32 %v697, %v749
        %v798 = vadd.f32 %v698, %v750
        %v799 = vadd.f32 %v699, %v751
        %v800 = vadd.f32 %v700, %v752
        %v801 = vadd.f32 %v701, %v753
        %v802 = vadd.f32 %v702, %v754
        %v803 = vadd.f32 %v703, %v755
        %v804 = vadd.f32 %v704, %v756
        %v805 = vadd.f32 %v705, %v757
        %v806 = vlaneseq
        %v807 = vshrl.u32 %v806, 7
        %v808 = vsub.s32 3, %v807
        %v809 = vrot.slane %v248, %v808
        %v810 = vmul.f32 %v253, %v809
        %v811 = vmul.f32 %v254, %v809
        %v812 = vmul.f32 %v255, %v809
        %v813 = vmul.f32 %v256, %v809
        %v814 = vmul.f32 %v257, %v809
        %v815 = vmul.f32 %v258, %v809
        %v816 = vmul.f32 %v259, %v809
        %v817 = vmul.f32 %v260, %v809
        %v818 = vmul.f32 %v261, %v809
        %v819 = vmul.f32 %v262, %v809
        %v820 = vmul.f32 %v263, %v809
        %v821 = vmul.f32 %v264, %v809
        %v822 = vmul.f32 %v265, %v809
        %v823 = vmul.f32 %v266, %v809
        %v824 = vmul.f32 %v267, %v809
        %v825 = vmul.f32 %v268, %v809
        %v826 = vmul.f32 %v269, %v809
        %v827 = vmul.f32 %v270, %v809
        %v828 = vmul.f32 %v271, %v809
        %v829 = vmul.f32 %v272, %v809
        %v830 = vmul.f32 %v273, %v809
        %v831 = vmul.f32 %v274, %v809
        %v832 = vmul.f32 %v275, %v809
        %v833 = vmul.f32 %v276, %v809
        %v834 = vmul.f32 %v283, %v809
        %v835 = vmul.f32 %v284, %v809
        %v836 = vmul.f32 %v285, %v809
        %v837 = vmul.f32 %v286, %v809
        %v838 = vmul.f32 %v287, %v809
        %v839 = vmul.f32 %v288, %v809
        %v840 = vmul.f32 %v289, %v809
        %v841 = vmul.f32 %v290, %v809
        %v842 = vmul.f32 %v291, %v809
        %v843 = vmul.f32 %v292, %v809
        %v844 = vmul.f32 %v293, %v809
        %v845 = vmul.f32 %v294, %v809
        %v846 = vmul.f32 %v295, %v809
        %v847 = vmul.f32 %v296, %v809
        %v848 = vmul.f32 %v297, %v809
        %v849 = vmul.f32 %v298, %v809
        %v850 = vmul.f32 %v299, %v809
        %v851 = vmul.f32 %v300, %v809
        %v852 = vmul.f32 %v301, %v809
        %v853 = vmul.f32 %v302, %v809
        %v854 = vmul.f32 %v303, %v809
        %v855 = vmul.f32 %v304, %v809
        %v856 = vmul.f32 %v305, %v809
        %v857 = vmul.f32 %v306, %v809
        %v858 = vadd.f32 %v758, %v810
        %v859 = vadd.f32 %v759, %v811
        %v860 = vadd.f32 %v760, %v812
        %v861 = vadd.f32 %v761, %v813
        %v862 = vadd.f32 %v762, %v814
        %v863 = vadd.f32 %v763, %v815
        %v864 = vadd.f32 %v764, %v816
        %v865 = vadd.f32 %v765, %v817
        %v866 = vadd.f32 %v766, %v818
        %v867 = vadd.f32 %v767, %v819
        %v868 = vadd.f32 %v768, %v820
        %v869 = vadd.f32 %v769, %v821
        %v870 = vadd.f32 %v770, %v822
        %v871 = vadd.f32 %v771, %v823
        %v872 = vadd.f32 %v772, %v824
        %v873 = vadd.f32 %v773, %v825
        %v874 = vadd.f32 %v774, %v826
        %v875 = vadd.f32 %v775, %v827
        %v876 = vadd.f32 %v776, %v828
        %v877 = vadd.f32 %v777, %v829
        %v878 = vadd.f32 %v778, %v830
        %v879 = vadd.f32 %v779, %v831
        %v880 = vadd.f32 %v780, %v832
        %v881 = vadd.f32 %v781, %v833
        %v882 = vadd.f32 %v782, %v834
        %v883 = vadd.f32 %v783, %v835
        %v884 = vadd.f32 %v784, %v836
        %v885 = vadd.f32 %v785, %v837
        %v886 = vadd.f32 %v786, %v838
        %v887 = vadd.f32 %v787, %v839
        %v888 = vadd.f32 %v788, %v840
        %v889 = vadd.f32 %v789, %v841
        %v890 = vadd.f32 %v790, %v842
        %v891 = vadd.f32 %v791, %v843
        %v892 = vadd.f32 %v792, %v844
        %v893 = vadd.f32 %v793, %v845
        %v894 = vadd.f32 %v794, %v846
        %v895 = vadd.f32 %v795, %v847
        %v896 = vadd.f32 %v796, %v848
        %v897 = vadd.f32 %v797, %v849
        %v898 = vadd.f32 %v798, %v850
        %v899 = vadd.f32 %v799, %v851
        %v900 = vadd.f32 %v800, %v852
        %v901 = vadd.f32 %v801, %v853
        %v902 = vadd.f32 %v802, %v854
        %v903 = vadd.f32 %v803, %v855
        %v904 = vadd.f32 %v804, %v856
        %v905 = vadd.f32 %v805, %v857
        %v906 = vlaneseq
        %v907 = vshrl.u32 %v906, 7
        %v908 = vsub.s32 4, %v907
        %v909 = vrot.slane %v248, %v908
        %v910 = vmul.f32 %v428, %v909
        %v911 = vmul.f32 %v427, %v909
        %v912 = vmul.f32 %v426, %v909
        %v913 = vmul.f32 %v425, %v909
        %v914 = vmul.f32 %v424, %v909
        %v915 = vmul.f32 %v423, %v909
        %v916 = vmul.f32 %v422, %v909
        %v917 = vmul.f32 %v421, %v909
        %v918 = vmul.f32 %v420, %v909
        %v919 = vmul.f32 %v419, %v909
        %v920 = vmul.f32 %v418, %v909
        %v921 = vmul.f32 %v417, %v909
        %v922 = vmul.f32 %v416, %v909
        %v923 = vmul.f32 %v415, %v909
        %v924 = vmul.f32 %v414, %v909
        %v925 = vmul.f32 %v413, %v909
        %v926 = vmul.f32 %v412, %v909
        %v927 = vmul.f32 %v411, %v909
        %v928 = vmul.f32 %v410, %v909
        %v929 = vmul.f32 %v409, %v909
        %v930 = vmul.f32 %v408, %v909
        %v931 = vmul.f32 %v407, %v909
        %v932 = vmul.f32 %v406, %v909
        %v933 = vmul.f32 %v405, %v909
        %v934 = vmul.f32 %v398, %v909
        %v935 = vmul.f32 %v397, %v909
        %v936 = vmul.f32 %v396, %v909
        %v937 = vmul.f32 %v395, %v909
        %v938 = vmul.f32 %v394, %v909
        %v939 = vmul.f32 %v393, %v909
        %v940 = vmul.f32 %v392, %v909
        %v941 = vmul.f32 %v391, %v909
        %v942 = vmul.f32 %v390, %v909
        %v943 = vmul.f32 %v389, %v909
        %v944 = vmul.f32 %v388, %v909
        %v945 = vmul.f32 %v387, %v909
        %v946 = vmul.f32 %v386, %v909
        %v947 = vmul.f32 %v385, %v909
        %v948 = vmul.f32 %v384, %v909
        %v949 = vmul.f32 %v383, %v909
        %v950 = vmul.f32 %v382, %v909
        %v951 = vmul.f32 %v381, %v909
        %v952 = vmul.f32 %v380, %v909
        %v953 = vmul.f32 %v379, %v909
        %v954 = vmul.f32 %v378, %v909
        %v955 = vmul.f32 %v377, %v909
        %v956 = vmul.f32 %v376, %v909
        %v957 = vmul.f32 %v375, %v909
        %v958 = vadd.f32 %v858, %v910
        %v959 = vadd.f32 %v859, %v911
        %v960 = vadd.f32 %v860, %v912
        %v961 = vadd.f32 %v861, %v913
        %v962 = vadd.f32 %v862, %v914
        %v963 = vadd.f32 %v863, %v915
        %v964 = vadd.f32 %v864, %v916
        %v965 = vadd.f32 %v865, %v917
        %v966 = vadd.f32 %v866, %v918
        %v967 = vadd.f32 %v867, %v919
        %v968 = vadd.f32 %v868, %v920
        %v969 = vadd.f32 %v869, %v921
        %v970 = vadd.f32 %v870, %v922
        %v971 = vadd.f32 %v871, %v923
        %v972 = vadd.f32 %v872, %v924
        %v973 = vadd.f32 %v873, %v925
        %v974 = vadd.f32 %v874, %v926
        %v975 = vadd.f32 %v875, %v927
        %v976 = vadd.f32 %v876, %v928
        %v977 = vadd.f32 %v877, %v929
        %v978 = vadd.f32 %v878, %v930
        %v979 = vadd.f32 %v879, %v931
        %v980 = vadd.f32 %v880, %v932
        %v981 = vadd.f32 %v881, %v933
        %v982 = vadd.f32 %v882, %v934
        %v983 = vadd.f32 %v883, %v935
        %v984 = vadd.f32 %v884, %v936
        %v985 = vadd.f32 %v885, %v937
        %v986 = vadd.f32 %v886, %v938
        %v987 = vadd.f32 %v887, %v939
        %v988 = vadd.f32 %v888, %v940
        %v989 = vadd.f32 %v889, %v941
        %v990 = vadd.f32 %v890, %v942
        %v991 = vadd.f32 %v891, %v943
        %v992 = vadd.f32 %v892, %v944
        %v993 = vadd.f32 %v893, %v945
        %v994 = vadd.f32 %v894, %v946
        %v995 = vadd.f32 %v895, %v947
        %v996 = vadd.f32 %v896, %v948
        %v997 = vadd.f32 %v897, %v949
        %v998 = vadd.f32 %v898, %v950
        %v999 = vadd.f32 %v899, %v951
        %v1000 = vadd.f32 %v900, %v952
        %v1001 = vadd.f32 %v901, %v953
        %v1002 = vadd.f32 %v902, %v954
        %v1003 = vadd.f32 %v903, %v955
        %v1004 = vadd.f32 %v904, %v956
        %v1005 = vadd.f32 %v905, %v957
        %v1006 = vlaneseq
        %v1007 = vshrl.u32 %v1006, 7
        %v1008 = vsub.s32 5, %v1007
        %v1009 = vrot.slane %v248, %v1008
        %v1010 = vmul.f32 %v549, %v1009
        %v1011 = vmul.f32 %v548, %v1009
        %v1012 = vmul.f32 %v547, %v1009
        %v1013 = vmul.f32 %v546, %v1009
        %v1014 = vmul.f32 %v545, %v1009
        %v1015 = vmul.f32 %v544, %v1009
        %v1016 = vmul.f32 %v543, %v1009
        %v1017 = vmul.f32 %v542, %v1009
        %v1018 = vmul.f32 %v541, %v1009
        %v1019 = vmul.f32 %v540, %v1009
        %v1020 = vmul.f32 %v539, %v1009
        %v1021 = vmul.f32 %v538, %v1009
        %v1022 = vmul.f32 %v537, %v1009
        %v1023 = vmul.f32 %v536, %v1009
        %v1024 = vmul.f32 %v535, %v1009
        %v1025 = vmul.f32 %v534, %v1009
        %v1026 = vmul.f32 %v533, %v1009
        %v1027 = vmul.f32 %v532, %v1009
        %v1028 = vmul.f32 %v531, %v1009
        %v1029 = vmul.f32 %v530, %v1009
        %v1030 = vmul.f32 %v529, %v1009
        %v1031 = vmul.f32 %v528, %v1009
        %v1032 = vmul.f32 %v527, %v1009
        %v1033 = vmul.f32 %v526, %v1009
        %v1034 = vmul.f32 %v519, %v1009
        %v1035 = vmul.f32 %v518, %v1009
        %v1036 = vmul.f32 %v517, %v1009
        %v1037 = vmul.f32 %v516, %v1009
        %v1038 = vmul.f32 %v515, %v1009
        %v1039 = vmul.f32 %v514, %v1009
        %v1040 = vmul.f32 %v513, %v1009
        %v1041 = vmul.f32 %v512, %v1009
        %v1042 = vmul.f32 %v511, %v1009
        %v1043 = vmul.f32 %v510, %v1009
        %v1044 = vmul.f32 %v509, %v1009
        %v1045 = vmul.f32 %v508, %v1009
        %v1046 = vmul.f32 %v507, %v1009
        %v1047 = vmul.f32 %v506, %v1009
        %v1048 = vmul.f32 %v505, %v1009
        %v1049 = vmul.f32 %v504, %v1009
        %v1050 = vmul.f32 %v503, %v1009
        %v1051 = vmul.f32 %v502, %v1009
        %v1052 = vmul.f32 %v501, %v1009
        %v1053 = vmul.f32 %v500, %v1009
        %v1054 = vmul.f32 %v499, %v1009
        %v1055 = vmul.f32 %v498, %v1009
        %v1056 = vmul.f32 %v497, %v1009
        %v1057 = vmul.f32 %v496, %v1009
        %v1058 = vadd.f32 %v958, %v1010
        %v1059 = vadd.f32 %v959, %v1011
        %v1060 = vadd.f32 %v960, %v1012
        %v1061 = vadd.f32 %v961, %v1013
        %v1062 = vadd.f32 %v962, %v1014
        %v1063 = vadd.f32 %v963, %v1015
        %v1064 = vadd.f32 %v964, %v1016
        %v1065 = vadd.f32 %v965, %v1017
        %v1066 = vadd.f32 %v966, %v1018
        %v1067 = vadd.f32 %v967, %v1019
        %v1068 = vadd.f32 %v968, %v1020
        %v1069 = vadd.f32 %v969, %v1021
        %v1070 = vadd.f32 %v970, %v1022
        %v1071 = vadd.f32 %v971, %v1023
        %v1072 = vadd.f32 %v972, %v1024
        %v1073 = vadd.f32 %v973, %v1025
        %v1074 = vadd.f32 %v974, %v1026
        %v1075 = vadd.f32 %v975, %v1027
        %v1076 = vadd.f32 %v976, %v1028
        %v1077 = vadd.f32 %v977, %v1029
        %v1078 = vadd.f32 %v978, %v1030
        %v1079 = vadd.f32 %v979, %v1031
        %v1080 = vadd.f32 %v980, %v1032
        %v1081 = vadd.f32 %v981, %v1033
        %v1082 = vadd.f32 %v982, %v1034
        %v1083 = vadd.f32 %v983, %v1035
        %v1084 = vadd.f32 %v984, %v1036
        %v1085 = vadd.f32 %v985, %v1037
        %v1086 = vadd.f32 %v986, %v1038
        %v1087 = vadd.f32 %v987, %v1039
        %v1088 = vadd.f32 %v988, %v1040
        %v1089 = vadd.f32 %v989, %v1041
        %v1090 = vadd.f32 %v990, %v1042
        %v1091 = vadd.f32 %v991, %v1043
        %v1092 = vadd.f32 %v992, %v1044
        %v1093 = vadd.f32 %v993, %v1045
        %v1094 = vadd.f32 %v994, %v1046
        %v1095 = vadd.f32 %v995, %v1047
        %v1096 = vadd.f32 %v996, %v1048
        %v1097 = vadd.f32 %v997, %v1049
        %v1098 = vadd.f32 %v998, %v1050
        %v1099 = vadd.f32 %v999, %v1051
        %v1100 = vadd.f32 %v1000, %v1052
        %v1101 = vadd.f32 %v1001, %v1053
        %v1102 = vadd.f32 %v1002, %v1054
        %v1103 = vadd.f32 %v1003, %v1055
        %v1104 = vadd.f32 %v1004, %v1056
        %v1105 = vadd.f32 %v1005, %v1057
        %v1106 = vlaneseq
        %v1107 = vshrl.u32 %v1106, 7
        %v1108 = vsub.s32 6, %v1107
        %v1109 = vrot.slane %v248, %v1108
        %v1110 = vmul.f32 %v256, %v1109
        %v1111 = vmul.f32 %v257, %v1109
        %v1112 = vmul.f32 %v258, %v1109
        %v1113 = vmul.f32 %v259, %v1109
        %v1114 = vmul.f32 %v260, %v1109
        %v1115 = vmul.f32 %v261, %v1109
        %v1116 = vmul.f32 %v262, %v1109
        %v1117 = vmul.f32 %v263, %v1109
        %v1118 = vmul.f32 %v264, %v1109
        %v1119 = vmul.f32 %v265, %v1109
        %v1120 = vmul.f32 %v266, %v1109
        %v1121 = vmul.f32 %v267, %v1109
        %v1122 = vmul.f32 %v268, %v1109
        %v1123 = vmul.f32 %v269, %v1109
        %v1124 = vmul.f32 %v270, %v1109
        %v1125 = vmul.f32 %v271, %v1109
        %v1126 = vmul.f32 %v272, %v1109
        %v1127 = vmul.f32 %v273, %v1109
        %v1128 = vmul.f32 %v274, %v1109
        %v1129 = vmul.f32 %v275, %v1109
        %v1130 = vmul.f32 %v276, %v1109
        %v1131 = vmul.f32 %v277, %v1109
        %v1132 = vmul.f32 %v278, %v1109
        %v1133 = vmul.f32 %v279, %v1109
        %v1134 = vmul.f32 %v286, %v1109
        %v1135 = vmul.f32 %v287, %v1109
        %v1136 = vmul.f32 %v288, %v1109
        %v1137 = vmul.f32 %v289, %v1109
        %v1138 = vmul.f32 %v290, %v1109
        %v1139 = vmul.f32 %v291, %v1109
        %v1140 = vmul.f32 %v292, %v1109
        %v1141 = vmul.f32 %v293, %v1109
        %v1142 = vmul.f32 %v294, %v1109
        %v1143 = vmul.f32 %v295, %v1109
        %v1144 = vmul.f32 %v296, %v1109
        %v1145 = vmul.f32 %v297, %v1109
        %v1146 = vmul.f32 %v298, %v1109
        %v1147 = vmul.f32 %v299, %v1109
        %v1148 = vmul.f32 %v300, %v1109
        %v1149 = vmul.f32 %v301, %v1109
        %v1150 = vmul.f32 %v302, %v1109
        %v1151 = vmul.f32 %v303, %v1109
        %v1152 = vmul.f32 %v304, %v1109
        %v1153 = vmul.f32 %v305, %v1109
        %v1154 = vmul.f32 %v306, %v1109
        %v1155 = vmul.f32 %v307, %v1109
        %v1156 = vmul.f32 %v308, %v1109
        %v1157 = vmul.f32 %v309, %v1109
        %v1158 = vadd.f32 %v1058, %v1110
        %v1159 = vadd.f32 %v1059, %v1111
        %v1160 = vadd.f32 %v1060, %v1112
        %v1161 = vadd.f32 %v1061, %v1113
        %v1162 = vadd.f32 %v1062, %v1114
        %v1163 = vadd.f32 %v1063, %v1115
        %v1164 = vadd.f32 %v1064, %v1116
        %v1165 = vadd.f32 %v1065, %v1117
        %v1166 = vadd.f32 %v1066, %v1118
        %v1167 = vadd.f32 %v1067, %v1119
        %v1168 = vadd.f32 %v1068, %v1120
        %v1169 = vadd.f32 %v1069, %v1121
        %v1170 = vadd.f32 %v1070, %v1122
        %v1171 = vadd.f32 %v1071, %v1123
        %v1172 = vadd.f32 %v1072, %v1124
        %v1173 = vadd.f32 %v1073, %v1125
        %v1174 = vadd.f32 %v1074, %v1126
        %v1175 = vadd.f32 %v1075, %v1127
        %v1176 = vadd.f32 %v1076, %v1128
        %v1177 = vadd.f32 %v1077, %v1129
        %v1178 = vadd.f32 %v1078, %v1130
        %v1179 = vadd.f32 %v1079, %v1131
        %v1180 = vadd.f32 %v1080, %v1132
        %v1181 = vadd.f32 %v1081, %v1133
        %v1182 = vadd.f32 %v1082, %v1134
        %v1183 = vadd.f32 %v1083, %v1135
        %v1184 = vadd.f32 %v1084, %v1136
        %v1185 = vadd.f32 %v1085, %v1137
        %v1186 = vadd.f32 %v1086, %v1138
        %v1187 = vadd.f32 %v1087, %v1139
        %v1188 = vadd.f32 %v1088, %v1140
        %v1189 = vadd.f32 %v1089, %v1141
        %v1190 = vadd.f32 %v1090, %v1142
        %v1191 = vadd.f32 %v1091, %v1143
        %v1192 = vadd.f32 %v1092, %v1144
        %v1193 = vadd.f32 %v1093, %v1145
        %v1194 = vadd.f32 %v1094, %v1146
        %v1195 = vadd.f32 %v1095, %v1147
        %v1196 = vadd.f32 %v1096, %v1148
        %v1197 = vadd.f32 %v1097, %v1149
        %v1198 = vadd.f32 %v1098, %v1150
        %v1199 = vadd.f32 %v1099, %v1151
        %v1200 = vadd.f32 %v1100, %v1152
        %v1201 = vadd.f32 %v1101, %v1153
        %v1202 = vadd.f32 %v1102, %v1154
        %v1203 = vadd.f32 %v1103, %v1155
        %v1204 = vadd.f32 %v1104, %v1156
        %v1205 = vadd.f32 %v1105, %v1157
        %v1206 = vlaneseq
        %v1207 = vshrl.u32 %v1206, 7
        %v1208 = vsub.s32 7, %v1207
        %v1209 = vrot.slane %v248, %v1208
        %v1210 = vmul.f32 %v425, %v1209
        %v1211 = vmul.f32 %v424, %v1209
        %v1212 = vmul.f32 %v423, %v1209
        %v1213 = vmul.f32 %v422, %v1209
        %v1214 = vmul.f32 %v421, %v1209
        %v1215 = vmul.f32 %v420, %v1209
        %v1216 = vmul.f32 %v419, %v1209
        %v1217 = vmul.f32 %v418, %v1209
        %v1218 = vmul.f32 %v417, %v1209
        %v1219 = vmul.f32 %v416, %v1209
        %v1220 = vmul.f32 %v415, %v1209
        %v1221 = vmul.f32 %v414, %v1209
        %v1222 = vmul.f32 %v413, %v1209
        %v1223 = vmul.f32 %v412, %v1209
        %v1224 = vmul.f32 %v411, %v1209
        %v1225 = vmul.f32 %v410, %v1209
        %v1226 = vmul.f32 %v409, %v1209
        %v1227 = vmul.f32 %v408, %v1209
        %v1228 = vmul.f32 %v407, %v1209
        %v1229 = vmul.f32 %v406, %v1209
        %v1230 = vmul.f32 %v405, %v1209
        %v1231 = vmul.f32 %v404, %v1209
        %v1232 = vmul.f32 %v403, %v1209
        %v1233 = vmul.f32 %v402, %v1209
        %v1234 = vmul.f32 %v395, %v1209
        %v1235 = vmul.f32 %v394, %v1209
        %v1236 = vmul.f32 %v393, %v1209
        %v1237 = vmul.f32 %v392, %v1209
        %v1238 = vmul.f32 %v391, %v1209
        %v1239 = vmul.f32 %v390, %v1209
        %v1240 = vmul.f32 %v389, %v1209
        %v1241 = vmul.f32 %v388, %v1209
        %v1242 = vmul.f32 %v387, %v1209
        %v1243 = vmul.f32 %v386, %v1209
        %v1244 = vmul.f32 %v385, %v1209
        %v1245 = vmul.f32 %v384, %v1209
        %v1246 = vmul.f32 %v383, %v1209
        %v1247 = vmul.f32 %v382, %v1209
        %v1248 = vmul.f32 %v381, %v1209
        %v1249 = vmul.f32 %v380, %v1209
        %v1250 = vmul.f32 %v379, %v1209
        %v1251 = vmul.f32 %v378, %v1209
        %v1252 = vmul.f32 %v377, %v1209
        %v1253 = vmul.f32 %v376, %v1209
        %v1254 = vmul.f32 %v375, %v1209
        %v1255 = vmul.f32 %v374, %v1209
        %v1256 = vmul.f32 %v373, %v1209
        %v1257 = vmul.f32 %v432, %v1209
        %v1258 = vadd.f32 %v1158, %v1210
        %v1259 = vadd.f32 %v1159, %v1211
        %v1260 = vadd.f32 %v1160, %v1212
        %v1261 = vadd.f32 %v1161, %v1213
        %v1262 = vadd.f32 %v1162, %v1214
        %v1263 = vadd.f32 %v1163, %v1215
        %v1264 = vadd.f32 %v1164, %v1216
        %v1265 = vadd.f32 %v1165, %v1217
        %v1266 = vadd.f32 %v1166, %v1218
        %v1267 = vadd.f32 %v1167, %v1219
        %v1268 = vadd.f32 %v1168, %v1220
        %v1269 = vadd.f32 %v1169, %v1221
        %v1270 = vadd.f32 %v1170, %v1222
        %v1271 = vadd.f32 %v1171, %v1223
        %v1272 = vadd.f32 %v1172, %v1224
        %v1273 = vadd.f32 %v1173, %v1225
        %v1274 = vadd.f32 %v1174, %v1226
        %v1275 = vadd.f32 %v1175, %v1227
        %v1276 = vadd.f32 %v1176, %v1228
        %v1277 = vadd.f32 %v1177, %v1229
        %v1278 = vadd.f32 %v1178, %v1230
        %v1279 = vadd.f32 %v1179, %v1231
        %v1280 = vadd.f32 %v1180, %v1232
        %v1281 = vadd.f32 %v1181, %v1233
        %v1282 = vadd.f32 %v1182, %v1234
        %v1283 = vadd.f32 %v1183, %v1235
        %v1284 = vadd.f32 %v1184, %v1236
        %v1285 = vadd.f32 %v1185, %v1237
        %v1286 = vadd.f32 %v1186, %v1238
        %v1287 = vadd.f32 %v1187, %v1239
        %v1288 = vadd.f32 %v1188, %v1240
        %v1289 = vadd.f32 %v1189, %v1241
        %v1290 = vadd.f32 %v1190, %v1242
        %v1291 = vadd.f32 %v1191, %v1243
        %v1292 = vadd.f32 %v1192, %v1244
        %v1293 = vadd.f32 %v1193, %v1245
        %v1294 = vadd.f32 %v1194, %v1246
        %v1295 = vadd.f32 %v1195, %v1247
        %v1296 = vadd.f32 %v1196, %v1248
        %v1297 = vadd.f32 %v1197, %v1249
        %v1298 = vadd.f32 %v1198, %v1250
        %v1299 = vadd.f32 %v1199, %v1251
        %v1300 = vadd.f32 %v1200, %v1252
        %v1301 = vadd.f32 %v1201, %v1253
        %v1302 = vadd.f32 %v1202, %v1254
        %v1303 = vadd.f32 %v1203, %v1255
        %v1304 = vadd.f32 %v1204, %v1256
        %v1305 = vadd.f32 %v1205, %v1257
        %v1306 = vlaneseq
        %v1307 = vshrl.u32 %v1306, 7
        %v1308 = vsub.s32 0, %v1307
        %v1309 = vrot.slane %v249, %v1308
        %v1310 = vmul.f32 %v546, %v1309
        %v1311 = vmul.f32 %v545, %v1309
        %v1312 = vmul.f32 %v544, %v1309
        %v1313 = vmul.f32 %v543, %v1309
        %v1314 = vmul.f32 %v542, %v1309
        %v1315 = vmul.f32 %v541, %v1309
        %v1316 = vmul.f32 %v540, %v1309
        %v1317 = vmul.f32 %v539, %v1309
        %v1318 = vmul.f32 %v538, %v1309
        %v1319 = vmul.f32 %v537, %v1309
        %v1320 = vmul.f32 %v536, %v1309
        %v1321 = vmul.f32 %v535, %v1309
        %v1322 = vmul.f32 %v534, %v1309
        %v1323 = vmul.f32 %v533, %v1309
        %v1324 = vmul.f32 %v532, %v1309
        %v1325 = vmul.f32 %v531, %v1309
        %v1326 = vmul.f32 %v530, %v1309
        %v1327 = vmul.f32 %v529, %v1309
        %v1328 = vmul.f32 %v528, %v1309
        %v1329 = vmul.f32 %v527, %v1309
        %v1330 = vmul.f32 %v526, %v1309
        %v1331 = vmul.f32 %v525, %v1309
        %v1332 = vmul.f32 %v524, %v1309
        %v1333 = vmul.f32 %v523, %v1309
        %v1334 = vmul.f32 %v516, %v1309
        %v1335 = vmul.f32 %v515, %v1309
        %v1336 = vmul.f32 %v514, %v1309
        %v1337 = vmul.f32 %v513, %v1309
        %v1338 = vmul.f32 %v512, %v1309
        %v1339 = vmul.f32 %v511, %v1309
        %v1340 = vmul.f32 %v510, %v1309
        %v1341 = vmul.f32 %v509, %v1309
        %v1342 = vmul.f32 %v508, %v1309
        %v1343 = vmul.f32 %v507, %v1309
        %v1344 = vmul.f32 %v506, %v1309
        %v1345 = vmul.f32 %v505, %v1309
        %v1346 = vmul.f32 %v504, %v1309
        %v1347 = vmul.f32 %v503, %v1309
        %v1348 = vmul.f32 %v502, %v1309
        %v1349 = vmul.f32 %v501, %v1309
        %v1350 = vmul.f32 %v500, %v1309
        %v1351 = vmul.f32 %v499, %v1309
        %v1352 = vmul.f32 %v498, %v1309
        %v1353 = vmul.f32 %v497, %v1309
        %v1354 = vmul.f32 %v496, %v1309
        %v1355 = vmul.f32 %v495, %v1309
        %v1356 = vmul.f32 %v494, %v1309
        %v1357 = vmul.f32 %v553, %v1309
        %v1358 = vadd.f32 %v1258, %v1310
        %v1359 = vadd.f32 %v1259, %v1311
        %v1360 = vadd.f32 %v1260, %v1312
        %v1361 = vadd.f32 %v1261, %v1313
        %v1362 = vadd.f32 %v1262, %v1314
        %v1363 = vadd.f32 %v1263, %v1315
        %v1364 = vadd.f32 %v1264, %v1316
        %v1365 = vadd.f32 %v1265, %v1317
        %v1366 = vadd.f32 %v1266, %v1318
        %v1367 = vadd.f32 %v1267, %v1319
        %v1368 = vadd.f32 %v1268, %v1320
        %v1369 = vadd.f32 %v1269, %v1321
        %v1370 = vadd.f32 %v1270, %v1322
        %v1371 = vadd.f32 %v1271, %v1323
        %v1372 = vadd.f32 %v1272, %v1324
        %v1373 = vadd.f32 %v1273, %v1325
        %v1374 = vadd.f32 %v1274, %v1326
        %v1375 = vadd.f32 %v1275, %v1327
        %v1376 = vadd.f32 %v1276, %v1328
        %v1377 = vadd.f32 %v1277, %v1329
        %v1378 = vadd.f32 %v1278, %v1330
        %v1379 = vadd.f32 %v1279, %v1331
        %v1380 = vadd.f32 %v1280, %v1332
        %v1381 = vadd.f32 %v1281, %v1333
        %v1382 = vadd.f32 %v1282, %v1334
        %v1383 = vadd.f32 %v1283, %v1335
        %v1384 = vadd.f32 %v1284, %v1336
        %v1385 = vadd.f32 %v1285, %v1337
        %v1386 = vadd.f32 %v1286, %v1338
        %v1387 = vadd.f32 %v1287, %v1339
        %v1388 = vadd.f32 %v1288, %v1340
        %v1389 = vadd.f32 %v1289, %v1341
        %v1390 = vadd.f32 %v1290, %v1342
        %v1391 = vadd.f32 %v1291, %v1343
        %v1392 = vadd.f32 %v1292, %v1344
        %v1393 = vadd.f32 %v1293, %v1345
        %v1394 = vadd.f32 %v1294, %v1346
        %v1395 = vadd.f32 %v1295, %v1347
        %v1396 = vadd.f32 %v1296, %v1348
        %v1397 = vadd.f32 %v1297, %v1349
        %v1398 = vadd.f32 %v1298, %v1350
        %v1399 = vadd.f32 %v1299, %v1351
        %v1400 = vadd.f32 %v1300, %v1352
        %v1401 = vadd.f32 %v1301, %v1353
        %v1402 = vadd.f32 %v1302, %v1354
        %v1403 = vadd.f32 %v1303, %v1355
        %v1404 = vadd.f32 %v1304, %v1356
        %v1405 = vadd.f32 %v1305, %v1357
        %v1406 = vld [vmem:[#allocation7] sm:$0xff]
        %v1407 = vld [vmem:[#allocation7 + $0x8] sm:$0xff]
        %v1408 = vld [vmem:[#allocation7 + $0x10] sm:$0xff]
        %v1409 = vld [vmem:[#allocation7 + $0x18] sm:$0xff]
        %v1410 = vld [vmem:[#allocation7 + $0x20] sm:$0xff]
        %v1411 = vld [vmem:[#allocation7 + $0x28] sm:$0xff]
        %v1412 = vld [vmem:[#allocation7 + $0x30] sm:$0xff]
        %v1413 = vld [vmem:[#allocation7 + $0x38] sm:$0xff]
        %v1414 = vld [vmem:[#allocation7 + $0x40] sm:$0xff]
        %v1415 = vld [vmem:[#allocation7 + $0x48] sm:$0xff]
        %v1416 = vld [vmem:[#allocation7 + $0x50] sm:$0xff]
        %v1417 = vld [vmem:[#allocation7 + $0x58] sm:$0xff]
        %v1418 = vld [vmem:[#allocation7 + $0x60] sm:$0xff]
        %v1419 = vld [vmem:[#allocation7 + $0x68] sm:$0xff]
        %v1420 = vld [vmem:[#allocation7 + $0x70] sm:$0xff]
        %v1421 = vld [vmem:[#allocation7 + $0x78] sm:$0xff]
        %v1422 = vld [vmem:[%s3] sm:$0x1]
        %v1424 = vlaneseq
        %v1425 = vshrl.u32 %v1424, 7
        %v1426 = vsub.s32 0, %v1425
        %v1427 = vrot.slane %v1422, %v1426
        %1429 = vmatprep.subr.mxu0 0.0
        %1430 = vmatpush1.msra.mxu0 %v1406
        %1431 = vmatprep.subr.mxu0 0.0
        %1432 = vmatpush1.msra.mxu0 %v1407
        %1433 = vmatprep.subr.mxu0 0.0
        %1434 = vmatpush1.msra.mxu0 %v1408
        %1435 = vmatprep.subr.mxu0 0.0
        %1436 = vmatpush1.msra.mxu0 %v1409
        %1437 = vmatprep.subr.mxu0 0.0
        %1438 = vmatpush1.msra.mxu0 %v1410
        %1439 = vmatprep.subr.mxu0 0.0
        %1440 = vmatpush1.msra.mxu0 %v1411
        %1441 = vmatprep.subr.mxu0 0.0
        %1442 = vmatpush1.msra.mxu0 %v1412
        %1443 = vmatprep.subr.mxu0 0.0
        %1444 = vmatpush1.msra.mxu0 %v1413
        %1445 = vmatprep.subr.mxu0 0.0
        %1446 = vmatpush1.msra.mxu0 %v1414
        %1447 = vmatprep.subr.mxu0 0.0
        %1448 = vmatpush1.msra.mxu0 %v1415
        %1449 = vmatprep.subr.mxu0 0.0
        %1450 = vmatpush1.msra.mxu0 %v1416
        %1451 = vmatprep.subr.mxu0 0.0
        %1452 = vmatpush1.msra.mxu0 %v1417
        %1453 = vmatprep.subr.mxu0 0.0
        %1454 = vmatpush1.msra.mxu0 %v1418
        %1455 = vmatprep.subr.mxu0 0.0
        %1456 = vmatpush1.msra.mxu0 %v1419
        %1457 = vmatprep.subr.mxu0 0.0
        %1458 = vmatpush1.msra.mxu0 %v1420
        %1459 = vmatprep.subr.mxu0 0.0
        %1460 = vmatpush1.msra.mxu0 %v1421
        %1461 = vmatprep.subr.mxu0 0.0
        %1462 = vmatpush1.msra.mxu0 0.0
        %1463 = vmatprep.subr.mxu0 0.0
        %1464 = vmatpush1.msra.mxu0 0.0
        %1465 = vmatprep.subr.mxu0 0.0
        %1466 = vmatpush1.msra.mxu0 0.0
        %1467 = vmatprep.subr.mxu0 0.0
        %1468 = vmatpush1.msra.mxu0 0.0
        %1469 = vmatprep.subr.mxu0 0.0
        %1470 = vmatpush1.msra.mxu0 0.0
        %1471 = vmatprep.subr.mxu0 0.0
        %1472 = vmatpush1.msra.mxu0 0.0
        %1473 = vmatprep.subr.mxu0 0.0
        %1474 = vmatpush1.msra.mxu0 0.0
        %1475 = vmatprep.subr.mxu0 0.0
        %1476 = vmatpush1.msra.mxu0 0.0
        %1477 = vmatprep.subr.mxu0 0.0
        %1478 = vmatpush1.msra.mxu0 0.0
        %1479 = vmatprep.subr.mxu0 0.0
        %1480 = vmatpush1.msra.mxu0 0.0
        %1481 = vmatprep.subr.mxu0 0.0
        %1482 = vmatpush1.msra.mxu0 0.0
        %1483 = vmatprep.subr.mxu0 0.0
        %1484 = vmatpush1.msra.mxu0 0.0
        %1485 = vmatprep.subr.mxu0 0.0
        %1486 = vmatpush1.msra.mxu0 0.0
        %1487 = vmatprep.subr.mxu0 0.0
        %1488 = vmatpush1.msra.mxu0 0.0
        %1489 = vmatprep.subr.mxu0 0.0
        %1490 = vmatpush1.msra.mxu0 0.0
        %1491 = vmatprep.subr.mxu0 0.0
        %1492 = vmatpush1.msra.mxu0 0.0
        %1493 = vmatprep.mubr.f32.mxu0 0.0
        %1494 = vmatmul.mubr.f32.gmra.mrb[0].mxu0 %v1358
        %v1495 = vpop.f32.mrb[0].mxu0
        %v1496 = vadd.f32 %v1427, %v1495
        %v1497 = vpop.f32.mrb[0].mxu0
        %1498 = vmatprep.mubr.f32.mxu0 0.0
        %1499 = vmatmul.mubr.f32.gmra.mrb[0].mxu0 %v1359
        %v1500 = vpop.f32.mrb[0].mxu0
        %v1501 = vadd.f32 %v1427, %v1500
        %v1502 = vpop.f32.mrb[0].mxu0
        %1503 = vmatprep.mubr.f32.mxu0 0.0
        %1504 = vmatmul.mubr.f32.gmra.mrb[0].mxu0 %v1360
        %v1505 = vpop.f32.mrb[0].mxu0
        %v1506 = vadd.f32 %v1427, %v1505
        %v1507 = vpop.f32.mrb[0].mxu0
        %1508 = vmatprep.mubr.f32.mxu0 0.0
        %1509 = vmatmul.mubr.f32.gmra.mrb[0].mxu0 %v1361
        %v1510 = vpop.f32.mrb[0].mxu0
        %v1511 = vadd.f32 %v1427, %v1510
        %v1512 = vpop.f32.mrb[0].mxu0
        %1513 = vmatprep.mubr.f32.mxu0 0.0
        %1514 = vmatmul.mubr.f32.gmra.mrb[0].mxu0 %v1362
        %v1515 = vpop.f32.mrb[0].mxu0
        %v1516 = vadd.f32 %v1427, %v1515
        %v1517 = vpop.f32.mrb[0].mxu0
        %1518 = vmatprep.mubr.f32.mxu0 0.0
        %1519 = vmatmul.mubr.f32.gmra.mrb[0].mxu0 %v1363
        %v1520 = vpop.f32.mrb[0].mxu0
        %v1521 = vadd.f32 %v1427, %v1520
        %v1522 = vpop.f32.mrb[0].mxu0
        %1523 = vmatprep.mubr.f32.mxu0 0.0
        %1524 = vmatmul.mubr.f32.gmra.mrb[0].mxu0 %v1364
        %v1525 = vpop.f32.mrb[0].mxu0
        %v1526 = vadd.f32 %v1427, %v1525
        %v1527 = vpop.f32.mrb[0].mxu0
        %1528 = vmatprep.mubr.f32.mxu0 0.0
        %1529 = vmatmul.mubr.f32.gmra.mrb[0].mxu0 %v1365
        %v1530 = vpop.f32.mrb[0].mxu0
        %v1531 = vadd.f32 %v1427, %v1530
        %v1532 = vpop.f32.mrb[0].mxu0
        %1533 = vmatprep.mubr.f32.mxu0 0.0
        %1534 = vmatmul.mubr.f32.gmra.mrb[0].mxu0 %v1366
        %v1535 = vpop.f32.mrb[0].mxu0
        %v1536 = vadd.f32 %v1427, %v1535
        %v1537 = vpop.f32.mrb[0].mxu0
        %1538 = vmatprep.mubr.f32.mxu0 0.0
        %1539 = vmatmul.mubr.f32.gmra.mrb[0].mxu0 %v1367
        %v1540 = vpop.f32.mrb[0].mxu0
        %v1541 = vadd.f32 %v1427, %v1540
        %v1542 = vpop.f32.mrb[0].mxu0
        %1543 = vmatprep.mubr.f32.mxu0 0.0
        %1544 = vmatmul.mubr.f32.gmra.mrb[0].mxu0 %v1368
        %v1545 = vpop.f32.mrb[0].mxu0
        %v1546 = vadd.f32 %v1427, %v1545
        %v1547 = vpop.f32.mrb[0].mxu0
        %1548 = vmatprep.mubr.f32.mxu0 0.0
        %1549 = vmatmul.mubr.f32.gmra.mrb[0].mxu0 %v1369
        %v1550 = vpop.f32.mrb[0].mxu0
        %v1551 = vadd.f32 %v1427, %v1550
        %v1552 = vpop.f32.mrb[0].mxu0
        %1553 = vmatprep.mubr.f32.mxu0 0.0
        %1554 = vmatmul.mubr.f32.gmra.mrb[0].mxu0 %v1370
        %v1555 = vpop.f32.mrb[0].mxu0
        %v1556 = vadd.f32 %v1427, %v1555
        %v1557 = vpop.f32.mrb[0].mxu0
        %1558 = vmatprep.mubr.f32.mxu0 0.0
        %1559 = vmatmul.mubr.f32.gmra.mrb[0].mxu0 %v1371
        %v1560 = vpop.f32.mrb[0].mxu0
        %v1561 = vadd.f32 %v1427, %v1560
        %v1562 = vpop.f32.mrb[0].mxu0
        %1563 = vmatprep.mubr.f32.mxu0 0.0
        %1564 = vmatmul.mubr.f32.gmra.mrb[0].mxu0 %v1372
        %v1565 = vpop.f32.mrb[0].mxu0
        %v1566 = vadd.f32 %v1427, %v1565
        %v1567 = vpop.f32.mrb[0].mxu0
        %1568 = vmatprep.mubr.f32.mxu0 0.0
        %1569 = vmatmul.mubr.f32.gmra.mrb[0].mxu0 %v1373
        %v1570 = vpop.f32.mrb[0].mxu0
        %v1571 = vadd.f32 %v1427, %v1570
        %v1572 = vpop.f32.mrb[0].mxu0
        %1573 = vmatprep.mubr.f32.mxu0 0.0
        %1574 = vmatmul.mubr.f32.gmra.mrb[0].mxu0 %v1374
        %v1575 = vpop.f32.mrb[0].mxu0
        %v1576 = vadd.f32 %v1427, %v1575
        %v1577 = vpop.f32.mrb[0].mxu0
        %1578 = vmatprep.mubr.f32.mxu0 0.0
        %1579 = vmatmul.mubr.f32.gmra.mrb[0].mxu0 %v1375
        %v1580 = vpop.f32.mrb[0].mxu0
        %v1581 = vadd.f32 %v1427, %v1580
        %v1582 = vpop.f32.mrb[0].mxu0
        %1583 = vmatprep.mubr.f32.mxu0 0.0
        %1584 = vmatmul.mubr.f32.gmra.mrb[0].mxu0 %v1376
        %v1585 = vpop.f32.mrb[0].mxu0
        %v1586 = vadd.f32 %v1427, %v1585
        %v1587 = vpop.f32.mrb[0].mxu0
        %1588 = vmatprep.mubr.f32.mxu0 0.0
        %1589 = vmatmul.mubr.f32.gmra.mrb[0].mxu0 %v1377
        %v1590 = vpop.f32.mrb[0].mxu0
        %v1591 = vadd.f32 %v1427, %v1590
        %v1592 = vpop.f32.mrb[0].mxu0
        %1593 = vmatprep.mubr.f32.mxu0 0.0
        %1594 = vmatmul.mubr.f32.gmra.mrb[0].mxu0 %v1378
        %v1595 = vpop.f32.mrb[0].mxu0
        %v1596 = vadd.f32 %v1427, %v1595
        %v1597 = vpop.f32.mrb[0].mxu0
        %1598 = vmatprep.mubr.f32.mxu0 0.0
        %1599 = vmatmul.mubr.f32.gmra.mrb[0].mxu0 %v1379
        %v1600 = vpop.f32.mrb[0].mxu0
        %v1601 = vadd.f32 %v1427, %v1600
        %v1602 = vpop.f32.mrb[0].mxu0
        %1603 = vmatprep.mubr.f32.mxu0 0.0
        %1604 = vmatmul.mubr.f32.gmra.mrb[0].mxu0 %v1380
        %v1605 = vpop.f32.mrb[0].mxu0
        %v1606 = vadd.f32 %v1427, %v1605
        %v1607 = vpop.f32.mrb[0].mxu0
        %1608 = vmatprep.mubr.f32.mxu0 0.0
        %1609 = vmatmul.mubr.f32.gmra.mrb[0].mxu0 %v1381
        %v1610 = vpop.f32.mrb[0].mxu0
        %v1611 = vadd.f32 %v1427, %v1610
        %v1612 = vpop.f32.mrb[0].mxu0
        %1613 = vmatprep.mubr.f32.mxu0 0.0
        %1614 = vmatmul.mubr.f32.gmra.mrb[0].mxu0 %v1382
        %v1615 = vpop.f32.mrb[0].mxu0
        %v1616 = vadd.f32 %v1427, %v1615
        %v1617 = vpop.f32.mrb[0].mxu0
        %1618 = vmatprep.mubr.f32.mxu0 0.0
        %1619 = vmatmul.mubr.f32.gmra.mrb[0].mxu0 %v1383
        %v1620 = vpop.f32.mrb[0].mxu0
        %v1621 = vadd.f32 %v1427, %v1620
        %v1622 = vpop.f32.mrb[0].mxu0
        %1623 = vmatprep.mubr.f32.mxu0 0.0
        %1624 = vmatmul.mubr.f32.gmra.mrb[0].mxu0 %v1384
        %v1625 = vpop.f32.mrb[0].mxu0
        %v1626 = vadd.f32 %v1427, %v1625
        %v1627 = vpop.f32.mrb[0].mxu0
        %1628 = vmatprep.mubr.f32.mxu0 0.0
        %1629 = vmatmul.mubr.f32.gmra.mrb[0].mxu0 %v1385
        %v1630 = vpop.f32.mrb[0].mxu0
        %v1631 = vadd.f32 %v1427, %v1630
        %v1632 = vpop.f32.mrb[0].mxu0
        %1633 = vmatprep.mubr.f32.mxu0 0.0
        %1634 = vmatmul.mubr.f32.gmra.mrb[0].mxu0 %v1386
        %v1635 = vpop.f32.mrb[0].mxu0
        %v1636 = vadd.f32 %v1427, %v1635
        %v1637 = vpop.f32.mrb[0].mxu0
        %1638 = vmatprep.mubr.f32.mxu0 0.0
        %1639 = vmatmul.mubr.f32.gmra.mrb[0].mxu0 %v1387
        %v1640 = vpop.f32.mrb[0].mxu0
        %v1641 = vadd.f32 %v1427, %v1640
        %v1642 = vpop.f32.mrb[0].mxu0
        %1643 = vmatprep.mubr.f32.mxu0 0.0
        %1644 = vmatmul.mubr.f32.gmra.mrb[0].mxu0 %v1388
        %v1645 = vpop.f32.mrb[0].mxu0
        %v1646 = vadd.f32 %v1427, %v1645
        %v1647 = vpop.f32.mrb[0].mxu0
        %1648 = vmatprep.mubr.f32.mxu0 0.0
        %1649 = vmatmul.mubr.f32.gmra.mrb[0].mxu0 %v1389
        %v1650 = vpop.f32.mrb[0].mxu0
        %v1651 = vadd.f32 %v1427, %v1650
        %v1652 = vpop.f32.mrb[0].mxu0
        %1653 = vmatprep.mubr.f32.mxu0 0.0
        %1654 = vmatmul.mubr.f32.gmra.mrb[0].mxu0 %v1390
        %v1655 = vpop.f32.mrb[0].mxu0
        %v1656 = vadd.f32 %v1427, %v1655
        %v1657 = vpop.f32.mrb[0].mxu0
        %1658 = vmatprep.mubr.f32.mxu0 0.0
        %1659 = vmatmul.mubr.f32.gmra.mrb[0].mxu0 %v1391
        %v1660 = vpop.f32.mrb[0].mxu0
        %v1661 = vadd.f32 %v1427, %v1660
        %v1662 = vpop.f32.mrb[0].mxu0
        %1663 = vmatprep.mubr.f32.mxu0 0.0
        %1664 = vmatmul.mubr.f32.gmra.mrb[0].mxu0 %v1392
        %v1665 = vpop.f32.mrb[0].mxu0
        %v1666 = vadd.f32 %v1427, %v1665
        %v1667 = vpop.f32.mrb[0].mxu0
        %1668 = vmatprep.mubr.f32.mxu0 0.0
        %1669 = vmatmul.mubr.f32.gmra.mrb[0].mxu0 %v1393
        %v1670 = vpop.f32.mrb[0].mxu0
        %v1671 = vadd.f32 %v1427, %v1670
        %v1672 = vpop.f32.mrb[0].mxu0
        %1673 = vmatprep.mubr.f32.mxu0 0.0
        %1674 = vmatmul.mubr.f32.gmra.mrb[0].mxu0 %v1394
        %v1675 = vpop.f32.mrb[0].mxu0
        %v1676 = vadd.f32 %v1427, %v1675
        %v1677 = vpop.f32.mrb[0].mxu0
        %1678 = vmatprep.mubr.f32.mxu0 0.0
        %1679 = vmatmul.mubr.f32.gmra.mrb[0].mxu0 %v1395
        %v1680 = vpop.f32.mrb[0].mxu0
        %v1681 = vadd.f32 %v1427, %v1680
        %v1682 = vpop.f32.mrb[0].mxu0
        %1683 = vmatprep.mubr.f32.mxu0 0.0
        %1684 = vmatmul.mubr.f32.gmra.mrb[0].mxu0 %v1396
        %v1685 = vpop.f32.mrb[0].mxu0
        %v1686 = vadd.f32 %v1427, %v1685
        %v1687 = vpop.f32.mrb[0].mxu0
        %1688 = vmatprep.mubr.f32.mxu0 0.0
        %1689 = vmatmul.mubr.f32.gmra.mrb[0].mxu0 %v1397
        %v1690 = vpop.f32.mrb[0].mxu0
        %v1691 = vadd.f32 %v1427, %v1690
        %v1692 = vpop.f32.mrb[0].mxu0
        %1693 = vmatprep.mubr.f32.mxu0 0.0
        %1694 = vmatmul.mubr.f32.gmra.mrb[0].mxu0 %v1398
        %v1695 = vpop.f32.mrb[0].mxu0
        %v1696 = vadd.f32 %v1427, %v1695
        %v1697 = vpop.f32.mrb[0].mxu0
        %1698 = vmatprep.mubr.f32.mxu0 0.0
        %1699 = vmatmul.mubr.f32.gmra.mrb[0].mxu0 %v1399
        %v1700 = vpop.f32.mrb[0].mxu0
        %v1701 = vadd.f32 %v1427, %v1700
        %v1702 = vpop.f32.mrb[0].mxu0
        %1703 = vmatprep.mubr.f32.mxu0 0.0
        %1704 = vmatmul.mubr.f32.gmra.mrb[0].mxu0 %v1400
        %v1705 = vpop.f32.mrb[0].mxu0
        %v1706 = vadd.f32 %v1427, %v1705
        %v1707 = vpop.f32.mrb[0].mxu0
        %1708 = vmatprep.mubr.f32.mxu0 0.0
        %1709 = vmatmul.mubr.f32.gmra.mrb[0].mxu0 %v1401
        %v1710 = vpop.f32.mrb[0].mxu0
        %v1711 = vadd.f32 %v1427, %v1710
        %v1712 = vpop.f32.mrb[0].mxu0
        %1713 = vmatprep.mubr.f32.mxu0 0.0
        %1714 = vmatmul.mubr.f32.gmra.mrb[0].mxu0 %v1402
        %v1715 = vpop.f32.mrb[0].mxu0
        %v1716 = vadd.f32 %v1427, %v1715
        %v1717 = vpop.f32.mrb[0].mxu0
        %1718 = vmatprep.mubr.f32.mxu0 0.0
        %1719 = vmatmul.mubr.f32.gmra.mrb[0].mxu0 %v1403
        %v1720 = vpop.f32.mrb[0].mxu0
        %v1721 = vadd.f32 %v1427, %v1720
        %v1722 = vpop.f32.mrb[0].mxu0
        %1723 = vmatprep.mubr.f32.mxu0 0.0
        %1724 = vmatmul.mubr.f32.gmra.mrb[0].mxu0 %v1404
        %v1725 = vpop.f32.mrb[0].mxu0
        %v1726 = vadd.f32 %v1427, %v1725
        %v1727 = vpop.f32.mrb[0].mxu0
        %1728 = vmatprep.mubr.f32.mxu0 0.0
        %1729 = vmatmul.mubr.f32.gmra.mrb[0].mxu0 %v1405
        %v1730 = vpop.f32.mrb[0].mxu0
        %v1731 = vadd.f32 %v1427, %v1730
        %v1732 = vpop.f32.mrb[0].mxu0
        %1733 = vdwg.mxu0
        %1734 = vst [vmem:[%s245] sm:$0xff] %v1496
        %1735 = vst [vmem:[%s245 + $0x8] sm:$0xff] %v1501
        %1736 = vst [vmem:[%s245 + $0x10] sm:$0xff] %v1506
        %1737 = vst [vmem:[%s245 + $0x18] sm:$0xff] %v1511
        %1738 = vst [vmem:[%s245 + $0x20] sm:$0xff] %v1516
        %1739 = vst [vmem:[%s245 + $0x28] sm:$0xff] %v1521
        %1740 = vst [vmem:[%s245 + $0x30] sm:$0xff] %v1526
        %1741 = vst [vmem:[%s245 + $0x38] sm:$0xff] %v1531
        %1742 = vst [vmem:[%s245 + $0x40] sm:$0xff] %v1536
        %1743 = vst [vmem:[%s245 + $0x48] sm:$0xff] %v1541
        %1744 = vst [vmem:[%s245 + $0x50] sm:$0xff] %v1546
        %1745 = vst [vmem:[%s245 + $0x58] sm:$0xff] %v1551
        %1746 = vst [vmem:[%s245 + $0x60] sm:$0xff] %v1556
        %1747 = vst [vmem:[%s245 + $0x68] sm:$0xff] %v1561
        %1748 = vst [vmem:[%s245 + $0x70] sm:$0xff] %v1566
        %1749 = vst [vmem:[%s245 + $0x78] sm:$0xff] %v1571
        %1750 = vst [vmem:[%s245 + $0x80] sm:$0xff] %v1576
        %1751 = vst [vmem:[%s245 + $0x88] sm:$0xff] %v1581
        %1752 = vst [vmem:[%s245 + $0x90] sm:$0xff] %v1586
        %1753 = vst [vmem:[%s245 + $0x98] sm:$0xff] %v1591
        %1754 = vst [vmem:[%s245 + $0xa0] sm:$0xff] %v1596
        %1755 = vst [vmem:[%s245 + $0xa8] sm:$0xff] %v1601
        %1756 = vst [vmem:[%s245 + $0xb0] sm:$0xff] %v1606
        %1757 = vst [vmem:[%s245 + $0xb8] sm:$0xff] %v1611
        %1758 = vst [vmem:[%s245 + $0xc0] sm:$0xff] %v1616
        %1759 = vst [vmem:[%s245 + $0xc8] sm:$0xff] %v1621
        %1760 = vst [vmem:[%s245 + $0xd0] sm:$0xff] %v1626
        %1761 = vst [vmem:[%s245 + $0xd8] sm:$0xff] %v1631
        %1762 = vst [vmem:[%s245 + $0xe0] sm:$0xff] %v1636
        %1763 = vst [vmem:[%s245 + $0xe8] sm:$0xff] %v1641
        %1764 = vst [vmem:[%s245 + $0xf0] sm:$0xff] %v1646
        %1765 = vst [vmem:[%s245 + $0xf8] sm:$0xff] %v1651
        %1766 = vst [vmem:[%s245 + $0x100] sm:$0xff] %v1656
        %1767 = vst [vmem:[%s245 + $0x108] sm:$0xff] %v1661
        %1768 = vst [vmem:[%s245 + $0x110] sm:$0xff] %v1666
        %1769 = vst [vmem:[%s245 + $0x118] sm:$0xff] %v1671
        %1770 = vst [vmem:[%s245 + $0x120] sm:$0xff] %v1676
        %1771 = vst [vmem:[%s245 + $0x128] sm:$0xff] %v1681
        %1772 = vst [vmem:[%s245 + $0x130] sm:$0xff] %v1686
        %1773 = vst [vmem:[%s245 + $0x138] sm:$0xff] %v1691
        %1774 = vst [vmem:[%s245 + $0x140] sm:$0xff] %v1696
        %1775 = vst [vmem:[%s245 + $0x148] sm:$0xff] %v1701
        %1776 = vst [vmem:[%s245 + $0x150] sm:$0xff] %v1706
        %1777 = vst [vmem:[%s245 + $0x158] sm:$0xff] %v1711
        %1778 = vst [vmem:[%s245 + $0x160] sm:$0xff] %v1716
        %1779 = vst [vmem:[%s245 + $0x168] sm:$0xff] %v1721
        %1780 = vst [vmem:[%s245 + $0x170] sm:$0xff] %v1726
        %1781 = vst [vmem:[%s245 + $0x178] sm:$0xff] %v1731
        %s1782 = sand.u32 %s119, 1
        %s1783 = scalar_lea.sflag [#allocation4], %s1782
        %s1784 = sand.u32 %s119, 1
        %s1785 = smul.addr %s1784, 384
        %s1786 = scalar_lea.vmem [#allocation8], %s1785
        // Predicated region
        $region49: #{tpu_custom_call.1} parent=35 // pred_check
          %p1787 = pneg %p129
        $region50: #{tpu_custom_call.1} parent=35 // pred_check_branch
          %1789 = sbr.rel (%p1787) target = $region52
        $region51: #{tpu_custom_call.1} parent=35 // pred_region
          %s1790 = smul.u32 2, %s22
          %s1792 = ssub.s32 6144, 6144
          %1793 = vsyncadd %s1783, %s1792
          %s1794 = smul.addr %s1790, 24
          %s1795 = smul.addr %s1794, 128
          %s1796 = scalar_lea.hbm %s4, %s1795
          %s1797 = sshll.u32 %s1786, 4
          %s1798 = int_to_ptr.vmem [resolvable:$true] %s1797
          %1803 = dma.vmem_to_hbm [thread:$0]  %s1798, 6144, %s1796, %s1783, 128, 128, 8
        $region52: #{tpu_custom_call.1} parent=35 // pred_fallthru
          _
      $region36: #{tpu_custom_call.1} parent=5 // pred_fallthru
        _
      %p1804 = scmp.le.s32.totalorder 2, %s17
      // Predicated region
      $region53: #{tpu_custom_call.1} parent=5 // pred_check
        %p1805 = pneg %p1804
      $region54: #{tpu_custom_call.1} parent=5 // pred_check_branch
        %1807 = sbr.rel (%p1805) target = $region56
      $region55: #{tpu_custom_call.1} parent=5 // pred_region
        %s1808 = ssub.s32 %s17, 2
        // Predicated region
        $region57: #{tpu_custom_call.1} parent=55 // pred_check
          %p1809 = pneg %p135
        $region58: #{tpu_custom_call.1} parent=55 // pred_check_branch
          %1811 = sbr.rel (%p1809) target = $region60
        $region59: #{tpu_custom_call.1} parent=55 // pred_region
          %s1812 = sand.u32 %s120, 1
          %s1813 = scalar_lea.sflag [#allocation4], %s1812
          %s1814 = sand.u32 %s120, 1
          %s1815 = smul.addr %s1814, 384
          %s1816 = scalar_lea.vmem [#allocation8], %s1815
          %1817 = dma.done %s1813, 6144
        $region60: #{tpu_custom_call.1} parent=55 // pred_fallthru
          _
      $region56: #{tpu_custom_call.1} parent=5 // pred_fallthru
        _
    $region6: #{tpu_custom_call.1} parent=1 // loop_footer
      %s21 = sadd.s32 1, %s17
    $region7: #{tpu_custom_call.1} parent=1 // loop_footer_branch
      %16 = sbr.rel target = $region3
    $region8: #{tpu_custom_call.1} parent=1 // loop_exit
      _
    %1818 = vsyncpa [#allocation3], 1
    %s1819 = scalar_lea.sflag [#allocation3], 1
    %1820 = vsyncpa %s1819, 1
    %1821 = vsyncpa [#allocation6], 1
    %1822 = vsyncpa [#allocation4], 1
    %s1823 = scalar_lea.sflag [#allocation4], 1
    %1824 = vsyncpa %s1823, 1

</llo_original>
